<compile_context>
chip_gen: v7x
topology: tpu7x:2x2x1
jax: 0.10.0
libtpu: 0.0.40
codegen_flags: <defaults>
</compile_context>

<pallas_src>
import functools

import jax
import jax.numpy as jnp
from jax import lax
from jax.experimental import pallas as pl
from jax.experimental.pallas import tpu as pltpu


def _round_up(x, m):
    return ((x + m - 1) // m) * m


def _emb_ln_kernel(ids_ref, table_hbm, gamma_ref, beta_ref, out_ref,
                   rows_vmem, copy_sems, *, tile, nsem, eps):
    # ids_ref:   (N_padded,) int32  scalar-prefetched token ids in SMEM
    # table_hbm: (V, D)             embedding table, left in HBM (pl.ANY)
    # gamma_ref: (1, D) f32         LayerNorm weight (VMEM)
    # beta_ref:  (1, D) f32         LayerNorm bias   (VMEM)
    # out_ref:   (tile, D) f32      output row tile  (VMEM)
    # rows_vmem: (tile, D)          gathered embedding rows (VMEM scratch)
    # copy_sems: (nsem,)            DMA semaphores (rolling window)
    t = pl.program_id(0)
    base = t * tile

    # ---- Row gather: id-driven HBM->VMEM DMAs, <= nsem in flight. ----
    pending = [None] * nsem
    for i in range(tile):                       # tile is a static constant
        slot = i % nsem
        if pending[slot] is not None:
            pending[slot].wait()                # free this semaphore slot
        row = ids_ref[base + i]                 # cheap SMEM scalar read
        cp = pltpu.make_async_copy(
            table_hbm.at[pl.ds(row, 1), :],     # one (1, D) row of the table
            rows_vmem.at[pl.ds(i, 1), :],
            copy_sems.at[slot])
        cp.start()
        pending[slot] = cp
    for cp in pending:
        if cp is not None:
            cp.wait()

    # ---- Fused LayerNorm over the last dim (single reduction pass). ----
    x = rows_vmem[...].astype(jnp.float32)      # (tile, D)
    d = x.shape[-1]
    s1 = jnp.sum(x, axis=-1, keepdims=True)
    s2 = jnp.sum(x * x, axis=-1, keepdims=True)
    mean = s1 * (1.0 / d)
    var = jnp.maximum(s2 * (1.0 / d) - mean * mean, 0.0)
    inv = lax.rsqrt(var + eps)
    out = (x - mean) * inv * gamma_ref[...] + beta_ref[...]
    out_ref[...] = out.astype(out_ref.dtype)


def embeddings_forward(input_ids, table, gamma, beta, *,
                       tile_rows=128, max_inflight_dmas=8, eps=1e-12):
    """input_ids: (B, S) int -> (B, S, D) float32 (embedding gather + LN)."""
    B, S = input_ids.shape
    V, D = table.shape
    N = B * S

    # Row tile: up to `tile_rows` rows per grid step, sublane (8) aligned.
    tile = min(tile_rows, _round_up(N, 8))
    Np = _round_up(N, tile)

    ids = input_ids.reshape(N).astype(jnp.int32)
    if Np != N:
        # Pad with a valid index (0); padded rows are sliced off below.
        ids = jnp.concatenate([ids, jnp.zeros((Np - N,), dtype=jnp.int32)])

    nsem = min(max_inflight_dmas, tile)
    kernel = functools.partial(_emb_ln_kernel, tile=tile, nsem=nsem, eps=eps)

    gamma2 = gamma.reshape(1, D).astype(jnp.float32)
    beta2 = beta.reshape(1, D).astype(jnp.float32)

    out = pl.pallas_call(
        kernel,
        out_shape=jax.ShapeDtypeStruct((Np, D), jnp.float32),
        grid_spec=pltpu.PrefetchScalarGridSpec(
            num_scalar_prefetch=1,                      # ids -> SMEM
            grid=(Np // tile,),
            in_specs=[
                pl.BlockSpec(memory_space=pl.ANY),          # table stays in HBM
                pl.BlockSpec((1, D), lambda t, ids: (0, 0)),  # gamma
                pl.BlockSpec((1, D), lambda t, ids: (0, 0)),  # beta
            ],
            out_specs=pl.BlockSpec((tile, D), lambda t, ids: (t, 0)),
            scratch_shapes=[
                pltpu.VMEM((tile, D), table.dtype),          # gathered rows
                pltpu.SemaphoreType.DMA((nsem,)),            # rolling DMA sems
            ],
        ),
        compiler_params=pltpu.CompilerParams(
            dimension_semantics=("parallel",)),
    )(ids, table, gamma2, beta2)

    return out[:N].reshape(B, S, D)


if __name__ == "__main__":
    # Module hyperparameters (small, consistent with the forward pass).
    d_model = 32
    vocab_size = 50
    max_position_embeddings = 16  # unused by forward (matches PyTorch module)
    batch, seq = 2, 8

    key = jax.random.PRNGKey(0)
    k_tab, k_ids = jax.random.split(key)

    # nn.Embedding default init ~ N(0, 1); padding_idx=1 row is zeroed.
    table = jax.random.normal(k_tab, (vocab_size, d_model), dtype=jnp.float32)
    table = table.at[1].set(0.0)
    # nn.LayerNorm default init: weight=1, bias=0.
    gamma = jnp.ones((d_model,), dtype=jnp.float32)
    beta = jnp.zeros((d_model,), dtype=jnp.float32)

    input_ids = jax.random.randint(k_ids, (batch, seq), 0, vocab_size,
                                   dtype=jnp.int32)
    # Make sure the padding index appears at least once.
    input_ids = input_ids.at[0, 0].set(1)

    out = embeddings_forward(input_ids, table, gamma, beta)
    out = jax.block_until_ready(out)

    # Reference check in plain JAX (two-pass LayerNorm, eps=1e-12).
    emb_ref = jnp.take(table, input_ids, axis=0)
    mean = jnp.mean(emb_ref, axis=-1, keepdims=True)
    var = jnp.mean((emb_ref - mean) ** 2, axis=-1, keepdims=True)
    ref = (emb_ref - mean) * lax.rsqrt(var + 1e-12) * gamma + beta
    assert out.shape == (batch, seq, d_model)
    assert jnp.allclose(out, ref, atol=1e-5, rtol=1e-5)

    print("KERNEL_OK")
</pallas_src>

<mosaic_0001>
module attributes {stable_mosaic.version = 11 : i64} {
  func.func @_emb_ln_kernel(%arg0: i32, %arg1: memref<16xi32, #tpu.memory_space<smem>>, %arg2: memref<50x32xf32, #tpu.memory_space<any>>, %arg3: memref<1x32xf32, #tpu.memory_space<vmem>>, %arg4: memref<1x32xf32, #tpu.memory_space<vmem>>, %arg5: memref<16x32xf32, #tpu.memory_space<vmem>>, %arg6: memref<16x32xf32, #tpu.memory_space<vmem>>, %arg7: memref<8x!tpu.dma_semaphore, #tpu.memory_space<semaphore_mem>>) attributes {dimension_semantics = [#tpu.dimension_semantics<parallel>], iteration_bounds = array<i64: 1>, scalar_prefetch = 1 : i64, scratch_operands = 2 : i64, tpu.core_type = #tpu.core_type<tc>, window_params = [{}, {pipeline_mode = #tpu.pipeline_mode<synchronous>, transform_indices = @transform_1, window_bounds = array<i64: 1, 32>}, {pipeline_mode = #tpu.pipeline_mode<synchronous>, transform_indices = @transform_2, window_bounds = array<i64: 1, 32>}, {transform_indices = @transform_3, window_bounds = array<i64: 16, 32>}]} {
    %c16_i32 = arith.constant 16 : i32
    %0 = arith.muli %arg0, %c16_i32 : i32
    %c0_i32 = arith.constant 0 : i32
    %1 = arith.addi %0, %c0_i32 : i32
    %2 = arith.index_cast %1 : i32 to index
    %3 = memref.load %arg1[%2] : memref<16xi32, #tpu.memory_space<smem>>
    %c0_i32_0 = arith.constant 0 : i32
    %c0_i32_1 = arith.constant 0 : i32
    %4 = tpu.memref_slice %arg2[%3, %c0_i32_1] : memref<50x32xf32, #tpu.memory_space<any>> -> memref<1x32xf32, #tpu.memory_space<any>>
    %c0_i32_2 = arith.constant 0 : i32
    %c0_i32_3 = arith.constant 0 : i32
    %5 = tpu.memref_slice %arg6[%c0_i32_2, %c0_i32_3] : memref<16x32xf32, #tpu.memory_space<vmem>> -> memref<1x32xf32, #tpu.memory_space<vmem>>
    %6 = tpu.memref_slice %arg7[%c0_i32_0] : memref<8x!tpu.dma_semaphore, #tpu.memory_space<semaphore_mem>> -> memref<1x!tpu.dma_semaphore, #tpu.memory_space<semaphore_mem>>
    %7 = tpu.memref_squeeze %6 : memref<1x!tpu.dma_semaphore, #tpu.memory_space<semaphore_mem>> -> memref<!tpu.dma_semaphore, #tpu.memory_space<semaphore_mem>>
    tpu.enqueue_dma source(%4 : memref<1x32xf32, #tpu.memory_space<any>>) target(%5 : memref<1x32xf32, #tpu.memory_space<vmem>>) target_semaphore(%7 : memref<!tpu.dma_semaphore, #tpu.memory_space<semaphore_mem>>)
    %c1_i32 = arith.constant 1 : i32
    %8 = arith.addi %0, %c1_i32 : i32
    %9 = arith.index_cast %8 : i32 to index
    %10 = memref.load %arg1[%9] : memref<16xi32, #tpu.memory_space<smem>>
    %c1_i32_4 = arith.constant 1 : i32
    %c0_i32_5 = arith.constant 0 : i32
    %11 = tpu.memref_slice %arg2[%10, %c0_i32_5] : memref<50x32xf32, #tpu.memory_space<any>> -> memref<1x32xf32, #tpu.memory_space<any>>
    %c1_i32_6 = arith.constant 1 : i32
    %c0_i32_7 = arith.constant 0 : i32
    %12 = tpu.memref_slice %arg6[%c1_i32_6, %c0_i32_7] : memref<16x32xf32, #tpu.memory_space<vmem>> -> memref<1x32xf32, #tpu.memory_space<vmem>>
    %13 = tpu.memref_slice %arg7[%c1_i32_4] : memref<8x!tpu.dma_semaphore, #tpu.memory_space<semaphore_mem>> -> memref<1x!tpu.dma_semaphore, #tpu.memory_space<semaphore_mem>>
    %14 = tpu.memref_squeeze %13 : memref<1x!tpu.dma_semaphore, #tpu.memory_space<semaphore_mem>> -> memref<!tpu.dma_semaphore, #tpu.memory_space<semaphore_mem>>
    tpu.enqueue_dma source(%11 : memref<1x32xf32, #tpu.memory_space<any>>) target(%12 : memref<1x32xf32, #tpu.memory_space<vmem>>) target_semaphore(%14 : memref<!tpu.dma_semaphore, #tpu.memory_space<semaphore_mem>>)
    %c2_i32 = arith.constant 2 : i32
    %15 = arith.addi %0, %c2_i32 : i32
    %16 = arith.index_cast %15 : i32 to index
    %17 = memref.load %arg1[%16] : memref<16xi32, #tpu.memory_space<smem>>
    %c2_i32_8 = arith.constant 2 : i32
    %c0_i32_9 = arith.constant 0 : i32
    %18 = tpu.memref_slice %arg2[%17, %c0_i32_9] : memref<50x32xf32, #tpu.memory_space<any>> -> memref<1x32xf32, #tpu.memory_space<any>>
    %c2_i32_10 = arith.constant 2 : i32
    %c0_i32_11 = arith.constant 0 : i32
    %19 = tpu.memref_slice %arg6[%c2_i32_10, %c0_i32_11] : memref<16x32xf32, #tpu.memory_space<vmem>> -> memref<1x32xf32, #tpu.memory_space<vmem>>
    %20 = tpu.memref_slice %arg7[%c2_i32_8] : memref<8x!tpu.dma_semaphore, #tpu.memory_space<semaphore_mem>> -> memref<1x!tpu.dma_semaphore, #tpu.memory_space<semaphore_mem>>
    %21 = tpu.memref_squeeze %20 : memref<1x!tpu.dma_semaphore, #tpu.memory_space<semaphore_mem>> -> memref<!tpu.dma_semaphore, #tpu.memory_space<semaphore_mem>>
    tpu.enqueue_dma source(%18 : memref<1x32xf32, #tpu.memory_space<any>>) target(%19 : memref<1x32xf32, #tpu.memory_space<vmem>>) target_semaphore(%21 : memref<!tpu.dma_semaphore, #tpu.memory_space<semaphore_mem>>)
    %c3_i32 = arith.constant 3 : i32
    %22 = arith.addi %0, %c3_i32 : i32
    %23 = arith.index_cast %22 : i32 to index
    %24 = memref.load %arg1[%23] : memref<16xi32, #tpu.memory_space<smem>>
    %c3_i32_12 = arith.constant 3 : i32
    %c0_i32_13 = arith.constant 0 : i32
    %25 = tpu.memref_slice %arg2[%24, %c0_i32_13] : memref<50x32xf32, #tpu.memory_space<any>> -> memref<1x32xf32, #tpu.memory_space<any>>
    %c3_i32_14 = arith.constant 3 : i32
    %c0_i32_15 = arith.constant 0 : i32
    %26 = tpu.memref_slice %arg6[%c3_i32_14, %c0_i32_15] : memref<16x32xf32, #tpu.memory_space<vmem>> -> memref<1x32xf32, #tpu.memory_space<vmem>>
    %27 = tpu.memref_slice %arg7[%c3_i32_12] : memref<8x!tpu.dma_semaphore, #tpu.memory_space<semaphore_mem>> -> memref<1x!tpu.dma_semaphore, #tpu.memory_space<semaphore_mem>>
    %28 = tpu.memref_squeeze %27 : memref<1x!tpu.dma_semaphore, #tpu.memory_space<semaphore_mem>> -> memref<!tpu.dma_semaphore, #tpu.memory_space<semaphore_mem>>
    tpu.enqueue_dma source(%25 : memref<1x32xf32, #tpu.memory_space<any>>) target(%26 : memref<1x32xf32, #tpu.memory_space<vmem>>) target_semaphore(%28 : memref<!tpu.dma_semaphore, #tpu.memory_space<semaphore_mem>>)
    %c4_i32 = arith.constant 4 : i32
    %29 = arith.addi %0, %c4_i32 : i32
    %30 = arith.index_cast %29 : i32 to index
    %31 = memref.load %arg1[%30] : memref<16xi32, #tpu.memory_space<smem>>
    %c4_i32_16 = arith.constant 4 : i32
    %c0_i32_17 = arith.constant 0 : i32
    %32 = tpu.memref_slice %arg2[%31, %c0_i32_17] : memref<50x32xf32, #tpu.memory_space<any>> -> memref<1x32xf32, #tpu.memory_space<any>>
    %c4_i32_18 = arith.constant 4 : i32
    %c0_i32_19 = arith.constant 0 : i32
    %33 = tpu.memref_slice %arg6[%c4_i32_18, %c0_i32_19] : memref<16x32xf32, #tpu.memory_space<vmem>> -> memref<1x32xf32, #tpu.memory_space<vmem>>
    %34 = tpu.memref_slice %arg7[%c4_i32_16] : memref<8x!tpu.dma_semaphore, #tpu.memory_space<semaphore_mem>> -> memref<1x!tpu.dma_semaphore, #tpu.memory_space<semaphore_mem>>
    %35 = tpu.memref_squeeze %34 : memref<1x!tpu.dma_semaphore, #tpu.memory_space<semaphore_mem>> -> memref<!tpu.dma_semaphore, #tpu.memory_space<semaphore_mem>>
    tpu.enqueue_dma source(%32 : memref<1x32xf32, #tpu.memory_space<any>>) target(%33 : memref<1x32xf32, #tpu.memory_space<vmem>>) target_semaphore(%35 : memref<!tpu.dma_semaphore, #tpu.memory_space<semaphore_mem>>)
    %c5_i32 = arith.constant 5 : i32
    %36 = arith.addi %0, %c5_i32 : i32
    %37 = arith.index_cast %36 : i32 to index
    %38 = memref.load %arg1[%37] : memref<16xi32, #tpu.memory_space<smem>>
    %c5_i32_20 = arith.constant 5 : i32
    %c0_i32_21 = arith.constant 0 : i32
    %39 = tpu.memref_slice %arg2[%38, %c0_i32_21] : memref<50x32xf32, #tpu.memory_space<any>> -> memref<1x32xf32, #tpu.memory_space<any>>
    %c5_i32_22 = arith.constant 5 : i32
    %c0_i32_23 = arith.constant 0 : i32
    %40 = tpu.memref_slice %arg6[%c5_i32_22, %c0_i32_23] : memref<16x32xf32, #tpu.memory_space<vmem>> -> memref<1x32xf32, #tpu.memory_space<vmem>>
    %41 = tpu.memref_slice %arg7[%c5_i32_20] : memref<8x!tpu.dma_semaphore, #tpu.memory_space<semaphore_mem>> -> memref<1x!tpu.dma_semaphore, #tpu.memory_space<semaphore_mem>>
    %42 = tpu.memref_squeeze %41 : memref<1x!tpu.dma_semaphore, #tpu.memory_space<semaphore_mem>> -> memref<!tpu.dma_semaphore, #tpu.memory_space<semaphore_mem>>
    tpu.enqueue_dma source(%39 : memref<1x32xf32, #tpu.memory_space<any>>) target(%40 : memref<1x32xf32, #tpu.memory_space<vmem>>) target_semaphore(%42 : memref<!tpu.dma_semaphore, #tpu.memory_space<semaphore_mem>>)
    %c6_i32 = arith.constant 6 : i32
    %43 = arith.addi %0, %c6_i32 : i32
    %44 = arith.index_cast %43 : i32 to index
    %45 = memref.load %arg1[%44] : memref<16xi32, #tpu.memory_space<smem>>
    %c6_i32_24 = arith.constant 6 : i32
    %c0_i32_25 = arith.constant 0 : i32
    %46 = tpu.memref_slice %arg2[%45, %c0_i32_25] : memref<50x32xf32, #tpu.memory_space<any>> -> memref<1x32xf32, #tpu.memory_space<any>>
    %c6_i32_26 = arith.constant 6 : i32
    %c0_i32_27 = arith.constant 0 : i32
    %47 = tpu.memref_slice %arg6[%c6_i32_26, %c0_i32_27] : memref<16x32xf32, #tpu.memory_space<vmem>> -> memref<1x32xf32, #tpu.memory_space<vmem>>
    %48 = tpu.memref_slice %arg7[%c6_i32_24] : memref<8x!tpu.dma_semaphore, #tpu.memory_space<semaphore_mem>> -> memref<1x!tpu.dma_semaphore, #tpu.memory_space<semaphore_mem>>
    %49 = tpu.memref_squeeze %48 : memref<1x!tpu.dma_semaphore, #tpu.memory_space<semaphore_mem>> -> memref<!tpu.dma_semaphore, #tpu.memory_space<semaphore_mem>>
    tpu.enqueue_dma source(%46 : memref<1x32xf32, #tpu.memory_space<any>>) target(%47 : memref<1x32xf32, #tpu.memory_space<vmem>>) target_semaphore(%49 : memref<!tpu.dma_semaphore, #tpu.memory_space<semaphore_mem>>)
    %c7_i32 = arith.constant 7 : i32
    %50 = arith.addi %0, %c7_i32 : i32
    %51 = arith.index_cast %50 : i32 to index
    %52 = memref.load %arg1[%51] : memref<16xi32, #tpu.memory_space<smem>>
    %c7_i32_28 = arith.constant 7 : i32
    %c0_i32_29 = arith.constant 0 : i32
    %53 = tpu.memref_slice %arg2[%52, %c0_i32_29] : memref<50x32xf32, #tpu.memory_space<any>> -> memref<1x32xf32, #tpu.memory_space<any>>
    %c7_i32_30 = arith.constant 7 : i32
    %c0_i32_31 = arith.constant 0 : i32
    %54 = tpu.memref_slice %arg6[%c7_i32_30, %c0_i32_31] : memref<16x32xf32, #tpu.memory_space<vmem>> -> memref<1x32xf32, #tpu.memory_space<vmem>>
    %55 = tpu.memref_slice %arg7[%c7_i32_28] : memref<8x!tpu.dma_semaphore, #tpu.memory_space<semaphore_mem>> -> memref<1x!tpu.dma_semaphore, #tpu.memory_space<semaphore_mem>>
    %56 = tpu.memref_squeeze %55 : memref<1x!tpu.dma_semaphore, #tpu.memory_space<semaphore_mem>> -> memref<!tpu.dma_semaphore, #tpu.memory_space<semaphore_mem>>
    tpu.enqueue_dma source(%53 : memref<1x32xf32, #tpu.memory_space<any>>) target(%54 : memref<1x32xf32, #tpu.memory_space<vmem>>) target_semaphore(%56 : memref<!tpu.dma_semaphore, #tpu.memory_space<semaphore_mem>>)
    %c0_i32_32 = arith.constant 0 : i32
    %c0_i32_33 = arith.constant 0 : i32
    %57 = tpu.memref_slice %arg2[%3, %c0_i32_33] : memref<50x32xf32, #tpu.memory_space<any>> -> memref<1x32xf32, #tpu.memory_space<any>>
    %c0_i32_34 = arith.constant 0 : i32
    %c0_i32_35 = arith.constant 0 : i32
    %58 = tpu.memref_slice %arg6[%c0_i32_34, %c0_i32_35] : memref<16x32xf32, #tpu.memory_space<vmem>> -> memref<1x32xf32, #tpu.memory_space<vmem>>
    %59 = tpu.memref_slice %arg7[%c0_i32_32] : memref<8x!tpu.dma_semaphore, #tpu.memory_space<semaphore_mem>> -> memref<1x!tpu.dma_semaphore, #tpu.memory_space<semaphore_mem>>
    %60 = tpu.memref_squeeze %59 : memref<1x!tpu.dma_semaphore, #tpu.memory_space<semaphore_mem>> -> memref<!tpu.dma_semaphore, #tpu.memory_space<semaphore_mem>>
    tpu.wait_dma2 semaphore(%60 : memref<!tpu.dma_semaphore, #tpu.memory_space<semaphore_mem>>) src(%57 : memref<1x32xf32, #tpu.memory_space<any>>) dst(%58 : memref<1x32xf32, #tpu.memory_space<vmem>>)
    %c8_i32 = arith.constant 8 : i32
    %61 = arith.addi %0, %c8_i32 : i32
    %62 = arith.index_cast %61 : i32 to index
    %63 = memref.load %arg1[%62] : memref<16xi32, #tpu.memory_space<smem>>
    %c0_i32_36 = arith.constant 0 : i32
    %c0_i32_37 = arith.constant 0 : i32
    %64 = tpu.memref_slice %arg2[%63, %c0_i32_37] : memref<50x32xf32, #tpu.memory_space<any>> -> memref<1x32xf32, #tpu.memory_space<any>>
    %c8_i32_38 = arith.constant 8 : i32
    %c0_i32_39 = arith.constant 0 : i32
    %65 = tpu.memref_slice %arg6[%c8_i32_38, %c0_i32_39] : memref<16x32xf32, #tpu.memory_space<vmem>> -> memref<1x32xf32, #tpu.memory_space<vmem>>
    %66 = tpu.memref_slice %arg7[%c0_i32_36] : memref<8x!tpu.dma_semaphore, #tpu.memory_space<semaphore_mem>> -> memref<1x!tpu.dma_semaphore, #tpu.memory_space<semaphore_mem>>
    %67 = tpu.memref_squeeze %66 : memref<1x!tpu.dma_semaphore, #tpu.memory_space<semaphore_mem>> -> memref<!tpu.dma_semaphore, #tpu.memory_space<semaphore_mem>>
    tpu.enqueue_dma source(%64 : memref<1x32xf32, #tpu.memory_space<any>>) target(%65 : memref<1x32xf32, #tpu.memory_space<vmem>>) target_semaphore(%67 : memref<!tpu.dma_semaphore, #tpu.memory_space<semaphore_mem>>)
    %c1_i32_40 = arith.constant 1 : i32
    %c0_i32_41 = arith.constant 0 : i32
    %68 = tpu.memref_slice %arg2[%10, %c0_i32_41] : memref<50x32xf32, #tpu.memory_space<any>> -> memref<1x32xf32, #tpu.memory_space<any>>
    %c1_i32_42 = arith.constant 1 : i32
    %c0_i32_43 = arith.constant 0 : i32
    %69 = tpu.memref_slice %arg6[%c1_i32_42, %c0_i32_43] : memref<16x32xf32, #tpu.memory_space<vmem>> -> memref<1x32xf32, #tpu.memory_space<vmem>>
    %70 = tpu.memref_slice %arg7[%c1_i32_40] : memref<8x!tpu.dma_semaphore, #tpu.memory_space<semaphore_mem>> -> memref<1x!tpu.dma_semaphore, #tpu.memory_space<semaphore_mem>>
    %71 = tpu.memref_squeeze %70 : memref<1x!tpu.dma_semaphore, #tpu.memory_space<semaphore_mem>> -> memref<!tpu.dma_semaphore, #tpu.memory_space<semaphore_mem>>
    tpu.wait_dma2 semaphore(%71 : memref<!tpu.dma_semaphore, #tpu.memory_space<semaphore_mem>>) src(%68 : memref<1x32xf32, #tpu.memory_space<any>>) dst(%69 : memref<1x32xf32, #tpu.memory_space<vmem>>)
    %c9_i32 = arith.constant 9 : i32
    %72 = arith.addi %0, %c9_i32 : i32
    %73 = arith.index_cast %72 : i32 to index
    %74 = memref.load %arg1[%73] : memref<16xi32, #tpu.memory_space<smem>>
    %c1_i32_44 = arith.constant 1 : i32
    %c0_i32_45 = arith.constant 0 : i32
    %75 = tpu.memref_slice %arg2[%74, %c0_i32_45] : memref<50x32xf32, #tpu.memory_space<any>> -> memref<1x32xf32, #tpu.memory_space<any>>
    %c9_i32_46 = arith.constant 9 : i32
    %c0_i32_47 = arith.constant 0 : i32
    %76 = tpu.memref_slice %arg6[%c9_i32_46, %c0_i32_47] : memref<16x32xf32, #tpu.memory_space<vmem>> -> memref<1x32xf32, #tpu.memory_space<vmem>>
    %77 = tpu.memref_slice %arg7[%c1_i32_44] : memref<8x!tpu.dma_semaphore, #tpu.memory_space<semaphore_mem>> -> memref<1x!tpu.dma_semaphore, #tpu.memory_space<semaphore_mem>>
    %78 = tpu.memref_squeeze %77 : memref<1x!tpu.dma_semaphore, #tpu.memory_space<semaphore_mem>> -> memref<!tpu.dma_semaphore, #tpu.memory_space<semaphore_mem>>
    tpu.enqueue_dma source(%75 : memref<1x32xf32, #tpu.memory_space<any>>) target(%76 : memref<1x32xf32, #tpu.memory_space<vmem>>) target_semaphore(%78 : memref<!tpu.dma_semaphore, #tpu.memory_space<semaphore_mem>>)
    %c2_i32_48 = arith.constant 2 : i32
    %c0_i32_49 = arith.constant 0 : i32
    %79 = tpu.memref_slice %arg2[%17, %c0_i32_49] : memref<50x32xf32, #tpu.memory_space<any>> -> memref<1x32xf32, #tpu.memory_space<any>>
    %c2_i32_50 = arith.constant 2 : i32
    %c0_i32_51 = arith.constant 0 : i32
    %80 = tpu.memref_slice %arg6[%c2_i32_50, %c0_i32_51] : memref<16x32xf32, #tpu.memory_space<vmem>> -> memref<1x32xf32, #tpu.memory_space<vmem>>
    %81 = tpu.memref_slice %arg7[%c2_i32_48] : memref<8x!tpu.dma_semaphore, #tpu.memory_space<semaphore_mem>> -> memref<1x!tpu.dma_semaphore, #tpu.memory_space<semaphore_mem>>
    %82 = tpu.memref_squeeze %81 : memref<1x!tpu.dma_semaphore, #tpu.memory_space<semaphore_mem>> -> memref<!tpu.dma_semaphore, #tpu.memory_space<semaphore_mem>>
    tpu.wait_dma2 semaphore(%82 : memref<!tpu.dma_semaphore, #tpu.memory_space<semaphore_mem>>) src(%79 : memref<1x32xf32, #tpu.memory_space<any>>) dst(%80 : memref<1x32xf32, #tpu.memory_space<vmem>>)
    %c10_i32 = arith.constant 10 : i32
    %83 = arith.addi %0, %c10_i32 : i32
    %84 = arith.index_cast %83 : i32 to index
    %85 = memref.load %arg1[%84] : memref<16xi32, #tpu.memory_space<smem>>
    %c2_i32_52 = arith.constant 2 : i32
    %c0_i32_53 = arith.constant 0 : i32
    %86 = tpu.memref_slice %arg2[%85, %c0_i32_53] : memref<50x32xf32, #tpu.memory_space<any>> -> memref<1x32xf32, #tpu.memory_space<any>>
    %c10_i32_54 = arith.constant 10 : i32
    %c0_i32_55 = arith.constant 0 : i32
    %87 = tpu.memref_slice %arg6[%c10_i32_54, %c0_i32_55] : memref<16x32xf32, #tpu.memory_space<vmem>> -> memref<1x32xf32, #tpu.memory_space<vmem>>
    %88 = tpu.memref_slice %arg7[%c2_i32_52] : memref<8x!tpu.dma_semaphore, #tpu.memory_space<semaphore_mem>> -> memref<1x!tpu.dma_semaphore, #tpu.memory_space<semaphore_mem>>
    %89 = tpu.memref_squeeze %88 : memref<1x!tpu.dma_semaphore, #tpu.memory_space<semaphore_mem>> -> memref<!tpu.dma_semaphore, #tpu.memory_space<semaphore_mem>>
    tpu.enqueue_dma source(%86 : memref<1x32xf32, #tpu.memory_space<any>>) target(%87 : memref<1x32xf32, #tpu.memory_space<vmem>>) target_semaphore(%89 : memref<!tpu.dma_semaphore, #tpu.memory_space<semaphore_mem>>)
    %c3_i32_56 = arith.constant 3 : i32
    %c0_i32_57 = arith.constant 0 : i32
    %90 = tpu.memref_slice %arg2[%24, %c0_i32_57] : memref<50x32xf32, #tpu.memory_space<any>> -> memref<1x32xf32, #tpu.memory_space<any>>
    %c3_i32_58 = arith.constant 3 : i32
    %c0_i32_59 = arith.constant 0 : i32
    %91 = tpu.memref_slice %arg6[%c3_i32_58, %c0_i32_59] : memref<16x32xf32, #tpu.memory_space<vmem>> -> memref<1x32xf32, #tpu.memory_space<vmem>>
    %92 = tpu.memref_slice %arg7[%c3_i32_56] : memref<8x!tpu.dma_semaphore, #tpu.memory_space<semaphore_mem>> -> memref<1x!tpu.dma_semaphore, #tpu.memory_space<semaphore_mem>>
    %93 = tpu.memref_squeeze %92 : memref<1x!tpu.dma_semaphore, #tpu.memory_space<semaphore_mem>> -> memref<!tpu.dma_semaphore, #tpu.memory_space<semaphore_mem>>
    tpu.wait_dma2 semaphore(%93 : memref<!tpu.dma_semaphore, #tpu.memory_space<semaphore_mem>>) src(%90 : memref<1x32xf32, #tpu.memory_space<any>>) dst(%91 : memref<1x32xf32, #tpu.memory_space<vmem>>)
    %c11_i32 = arith.constant 11 : i32
    %94 = arith.addi %0, %c11_i32 : i32
    %95 = arith.index_cast %94 : i32 to index
    %96 = memref.load %arg1[%95] : memref<16xi32, #tpu.memory_space<smem>>
    %c3_i32_60 = arith.constant 3 : i32
    %c0_i32_61 = arith.constant 0 : i32
    %97 = tpu.memref_slice %arg2[%96, %c0_i32_61] : memref<50x32xf32, #tpu.memory_space<any>> -> memref<1x32xf32, #tpu.memory_space<any>>
    %c11_i32_62 = arith.constant 11 : i32
    %c0_i32_63 = arith.constant 0 : i32
    %98 = tpu.memref_slice %arg6[%c11_i32_62, %c0_i32_63] : memref<16x32xf32, #tpu.memory_space<vmem>> -> memref<1x32xf32, #tpu.memory_space<vmem>>
    %99 = tpu.memref_slice %arg7[%c3_i32_60] : memref<8x!tpu.dma_semaphore, #tpu.memory_space<semaphore_mem>> -> memref<1x!tpu.dma_semaphore, #tpu.memory_space<semaphore_mem>>
    %100 = tpu.memref_squeeze %99 : memref<1x!tpu.dma_semaphore, #tpu.memory_space<semaphore_mem>> -> memref<!tpu.dma_semaphore, #tpu.memory_space<semaphore_mem>>
    tpu.enqueue_dma source(%97 : memref<1x32xf32, #tpu.memory_space<any>>) target(%98 : memref<1x32xf32, #tpu.memory_space<vmem>>) target_semaphore(%100 : memref<!tpu.dma_semaphore, #tpu.memory_space<semaphore_mem>>)
    %c4_i32_64 = arith.constant 4 : i32
    %c0_i32_65 = arith.constant 0 : i32
    %101 = tpu.memref_slice %arg2[%31, %c0_i32_65] : memref<50x32xf32, #tpu.memory_space<any>> -> memref<1x32xf32, #tpu.memory_space<any>>
    %c4_i32_66 = arith.constant 4 : i32
    %c0_i32_67 = arith.constant 0 : i32
    %102 = tpu.memref_slice %arg6[%c4_i32_66, %c0_i32_67] : memref<16x32xf32, #tpu.memory_space<vmem>> -> memref<1x32xf32, #tpu.memory_space<vmem>>
    %103 = tpu.memref_slice %arg7[%c4_i32_64] : memref<8x!tpu.dma_semaphore, #tpu.memory_space<semaphore_mem>> -> memref<1x!tpu.dma_semaphore, #tpu.memory_space<semaphore_mem>>
    %104 = tpu.memref_squeeze %103 : memref<1x!tpu.dma_semaphore, #tpu.memory_space<semaphore_mem>> -> memref<!tpu.dma_semaphore, #tpu.memory_space<semaphore_mem>>
    tpu.wait_dma2 semaphore(%104 : memref<!tpu.dma_semaphore, #tpu.memory_space<semaphore_mem>>) src(%101 : memref<1x32xf32, #tpu.memory_space<any>>) dst(%102 : memref<1x32xf32, #tpu.memory_space<vmem>>)
    %c12_i32 = arith.constant 12 : i32
    %105 = arith.addi %0, %c12_i32 : i32
    %106 = arith.index_cast %105 : i32 to index
    %107 = memref.load %arg1[%106] : memref<16xi32, #tpu.memory_space<smem>>
    %c4_i32_68 = arith.constant 4 : i32
    %c0_i32_69 = arith.constant 0 : i32
    %108 = tpu.memref_slice %arg2[%107, %c0_i32_69] : memref<50x32xf32, #tpu.memory_space<any>> -> memref<1x32xf32, #tpu.memory_space<any>>
    %c12_i32_70 = arith.constant 12 : i32
    %c0_i32_71 = arith.constant 0 : i32
    %109 = tpu.memref_slice %arg6[%c12_i32_70, %c0_i32_71] : memref<16x32xf32, #tpu.memory_space<vmem>> -> memref<1x32xf32, #tpu.memory_space<vmem>>
    %110 = tpu.memref_slice %arg7[%c4_i32_68] : memref<8x!tpu.dma_semaphore, #tpu.memory_space<semaphore_mem>> -> memref<1x!tpu.dma_semaphore, #tpu.memory_space<semaphore_mem>>
    %111 = tpu.memref_squeeze %110 : memref<1x!tpu.dma_semaphore, #tpu.memory_space<semaphore_mem>> -> memref<!tpu.dma_semaphore, #tpu.memory_space<semaphore_mem>>
    tpu.enqueue_dma source(%108 : memref<1x32xf32, #tpu.memory_space<any>>) target(%109 : memref<1x32xf32, #tpu.memory_space<vmem>>) target_semaphore(%111 : memref<!tpu.dma_semaphore, #tpu.memory_space<semaphore_mem>>)
    %c5_i32_72 = arith.constant 5 : i32
    %c0_i32_73 = arith.constant 0 : i32
    %112 = tpu.memref_slice %arg2[%38, %c0_i32_73] : memref<50x32xf32, #tpu.memory_space<any>> -> memref<1x32xf32, #tpu.memory_space<any>>
    %c5_i32_74 = arith.constant 5 : i32
    %c0_i32_75 = arith.constant 0 : i32
    %113 = tpu.memref_slice %arg6[%c5_i32_74, %c0_i32_75] : memref<16x32xf32, #tpu.memory_space<vmem>> -> memref<1x32xf32, #tpu.memory_space<vmem>>
    %114 = tpu.memref_slice %arg7[%c5_i32_72] : memref<8x!tpu.dma_semaphore, #tpu.memory_space<semaphore_mem>> -> memref<1x!tpu.dma_semaphore, #tpu.memory_space<semaphore_mem>>
    %115 = tpu.memref_squeeze %114 : memref<1x!tpu.dma_semaphore, #tpu.memory_space<semaphore_mem>> -> memref<!tpu.dma_semaphore, #tpu.memory_space<semaphore_mem>>
    tpu.wait_dma2 semaphore(%115 : memref<!tpu.dma_semaphore, #tpu.memory_space<semaphore_mem>>) src(%112 : memref<1x32xf32, #tpu.memory_space<any>>) dst(%113 : memref<1x32xf32, #tpu.memory_space<vmem>>)
    %c13_i32 = arith.constant 13 : i32
    %116 = arith.addi %0, %c13_i32 : i32
    %117 = arith.index_cast %116 : i32 to index
    %118 = memref.load %arg1[%117] : memref<16xi32, #tpu.memory_space<smem>>
    %c5_i32_76 = arith.constant 5 : i32
    %c0_i32_77 = arith.constant 0 : i32
    %119 = tpu.memref_slice %arg2[%118, %c0_i32_77] : memref<50x32xf32, #tpu.memory_space<any>> -> memref<1x32xf32, #tpu.memory_space<any>>
    %c13_i32_78 = arith.constant 13 : i32
    %c0_i32_79 = arith.constant 0 : i32
    %120 = tpu.memref_slice %arg6[%c13_i32_78, %c0_i32_79] : memref<16x32xf32, #tpu.memory_space<vmem>> -> memref<1x32xf32, #tpu.memory_space<vmem>>
    %121 = tpu.memref_slice %arg7[%c5_i32_76] : memref<8x!tpu.dma_semaphore, #tpu.memory_space<semaphore_mem>> -> memref<1x!tpu.dma_semaphore, #tpu.memory_space<semaphore_mem>>
    %122 = tpu.memref_squeeze %121 : memref<1x!tpu.dma_semaphore, #tpu.memory_space<semaphore_mem>> -> memref<!tpu.dma_semaphore, #tpu.memory_space<semaphore_mem>>
    tpu.enqueue_dma source(%119 : memref<1x32xf32, #tpu.memory_space<any>>) target(%120 : memref<1x32xf32, #tpu.memory_space<vmem>>) target_semaphore(%122 : memref<!tpu.dma_semaphore, #tpu.memory_space<semaphore_mem>>)
    %c6_i32_80 = arith.constant 6 : i32
    %c0_i32_81 = arith.constant 0 : i32
    %123 = tpu.memref_slice %arg2[%45, %c0_i32_81] : memref<50x32xf32, #tpu.memory_space<any>> -> memref<1x32xf32, #tpu.memory_space<any>>
    %c6_i32_82 = arith.constant 6 : i32
    %c0_i32_83 = arith.constant 0 : i32
    %124 = tpu.memref_slice %arg6[%c6_i32_82, %c0_i32_83] : memref<16x32xf32, #tpu.memory_space<vmem>> -> memref<1x32xf32, #tpu.memory_space<vmem>>
    %125 = tpu.memref_slice %arg7[%c6_i32_80] : memref<8x!tpu.dma_semaphore, #tpu.memory_space<semaphore_mem>> -> memref<1x!tpu.dma_semaphore, #tpu.memory_space<semaphore_mem>>
    %126 = tpu.memref_squeeze %125 : memref<1x!tpu.dma_semaphore, #tpu.memory_space<semaphore_mem>> -> memref<!tpu.dma_semaphore, #tpu.memory_space<semaphore_mem>>
    tpu.wait_dma2 semaphore(%126 : memref<!tpu.dma_semaphore, #tpu.memory_space<semaphore_mem>>) src(%123 : memref<1x32xf32, #tpu.memory_space<any>>) dst(%124 : memref<1x32xf32, #tpu.memory_space<vmem>>)
    %c14_i32 = arith.constant 14 : i32
    %127 = arith.addi %0, %c14_i32 : i32
    %128 = arith.index_cast %127 : i32 to index
    %129 = memref.load %arg1[%128] : memref<16xi32, #tpu.memory_space<smem>>
    %c6_i32_84 = arith.constant 6 : i32
    %c0_i32_85 = arith.constant 0 : i32
    %130 = tpu.memref_slice %arg2[%129, %c0_i32_85] : memref<50x32xf32, #tpu.memory_space<any>> -> memref<1x32xf32, #tpu.memory_space<any>>
    %c14_i32_86 = arith.constant 14 : i32
    %c0_i32_87 = arith.constant 0 : i32
    %131 = tpu.memref_slice %arg6[%c14_i32_86, %c0_i32_87] : memref<16x32xf32, #tpu.memory_space<vmem>> -> memref<1x32xf32, #tpu.memory_space<vmem>>
    %132 = tpu.memref_slice %arg7[%c6_i32_84] : memref<8x!tpu.dma_semaphore, #tpu.memory_space<semaphore_mem>> -> memref<1x!tpu.dma_semaphore, #tpu.memory_space<semaphore_mem>>
    %133 = tpu.memref_squeeze %132 : memref<1x!tpu.dma_semaphore, #tpu.memory_space<semaphore_mem>> -> memref<!tpu.dma_semaphore, #tpu.memory_space<semaphore_mem>>
    tpu.enqueue_dma source(%130 : memref<1x32xf32, #tpu.memory_space<any>>) target(%131 : memref<1x32xf32, #tpu.memory_space<vmem>>) target_semaphore(%133 : memref<!tpu.dma_semaphore, #tpu.memory_space<semaphore_mem>>)
    %c7_i32_88 = arith.constant 7 : i32
    %c0_i32_89 = arith.constant 0 : i32
    %134 = tpu.memref_slice %arg2[%52, %c0_i32_89] : memref<50x32xf32, #tpu.memory_space<any>> -> memref<1x32xf32, #tpu.memory_space<any>>
    %c7_i32_90 = arith.constant 7 : i32
    %c0_i32_91 = arith.constant 0 : i32
    %135 = tpu.memref_slice %arg6[%c7_i32_90, %c0_i32_91] : memref<16x32xf32, #tpu.memory_space<vmem>> -> memref<1x32xf32, #tpu.memory_space<vmem>>
    %136 = tpu.memref_slice %arg7[%c7_i32_88] : memref<8x!tpu.dma_semaphore, #tpu.memory_space<semaphore_mem>> -> memref<1x!tpu.dma_semaphore, #tpu.memory_space<semaphore_mem>>
    %137 = tpu.memref_squeeze %136 : memref<1x!tpu.dma_semaphore, #tpu.memory_space<semaphore_mem>> -> memref<!tpu.dma_semaphore, #tpu.memory_space<semaphore_mem>>
    tpu.wait_dma2 semaphore(%137 : memref<!tpu.dma_semaphore, #tpu.memory_space<semaphore_mem>>) src(%134 : memref<1x32xf32, #tpu.memory_space<any>>) dst(%135 : memref<1x32xf32, #tpu.memory_space<vmem>>)
    %c15_i32 = arith.constant 15 : i32
    %138 = arith.addi %0, %c15_i32 : i32
    %139 = arith.index_cast %138 : i32 to index
    %140 = memref.load %arg1[%139] : memref<16xi32, #tpu.memory_space<smem>>
    %c7_i32_92 = arith.constant 7 : i32
    %c0_i32_93 = arith.constant 0 : i32
    %141 = tpu.memref_slice %arg2[%140, %c0_i32_93] : memref<50x32xf32, #tpu.memory_space<any>> -> memref<1x32xf32, #tpu.memory_space<any>>
    %c15_i32_94 = arith.constant 15 : i32
    %c0_i32_95 = arith.constant 0 : i32
    %142 = tpu.memref_slice %arg6[%c15_i32_94, %c0_i32_95] : memref<16x32xf32, #tpu.memory_space<vmem>> -> memref<1x32xf32, #tpu.memory_space<vmem>>
    %143 = tpu.memref_slice %arg7[%c7_i32_92] : memref<8x!tpu.dma_semaphore, #tpu.memory_space<semaphore_mem>> -> memref<1x!tpu.dma_semaphore, #tpu.memory_space<semaphore_mem>>
    %144 = tpu.memref_squeeze %143 : memref<1x!tpu.dma_semaphore, #tpu.memory_space<semaphore_mem>> -> memref<!tpu.dma_semaphore, #tpu.memory_space<semaphore_mem>>
    tpu.enqueue_dma source(%141 : memref<1x32xf32, #tpu.memory_space<any>>) target(%142 : memref<1x32xf32, #tpu.memory_space<vmem>>) target_semaphore(%144 : memref<!tpu.dma_semaphore, #tpu.memory_space<semaphore_mem>>)
    %c0_i32_96 = arith.constant 0 : i32
    %c0_i32_97 = arith.constant 0 : i32
    %145 = tpu.memref_slice %arg2[%63, %c0_i32_97] : memref<50x32xf32, #tpu.memory_space<any>> -> memref<1x32xf32, #tpu.memory_space<any>>
    %c8_i32_98 = arith.constant 8 : i32
    %c0_i32_99 = arith.constant 0 : i32
    %146 = tpu.memref_slice %arg6[%c8_i32_98, %c0_i32_99] : memref<16x32xf32, #tpu.memory_space<vmem>> -> memref<1x32xf32, #tpu.memory_space<vmem>>
    %147 = tpu.memref_slice %arg7[%c0_i32_96] : memref<8x!tpu.dma_semaphore, #tpu.memory_space<semaphore_mem>> -> memref<1x!tpu.dma_semaphore, #tpu.memory_space<semaphore_mem>>
    %148 = tpu.memref_squeeze %147 : memref<1x!tpu.dma_semaphore, #tpu.memory_space<semaphore_mem>> -> memref<!tpu.dma_semaphore, #tpu.memory_space<semaphore_mem>>
    tpu.wait_dma2 semaphore(%148 : memref<!tpu.dma_semaphore, #tpu.memory_space<semaphore_mem>>) src(%145 : memref<1x32xf32, #tpu.memory_space<any>>) dst(%146 : memref<1x32xf32, #tpu.memory_space<vmem>>)
    %c1_i32_100 = arith.constant 1 : i32
    %c0_i32_101 = arith.constant 0 : i32
    %149 = tpu.memref_slice %arg2[%74, %c0_i32_101] : memref<50x32xf32, #tpu.memory_space<any>> -> memref<1x32xf32, #tpu.memory_space<any>>
    %c9_i32_102 = arith.constant 9 : i32
    %c0_i32_103 = arith.constant 0 : i32
    %150 = tpu.memref_slice %arg6[%c9_i32_102, %c0_i32_103] : memref<16x32xf32, #tpu.memory_space<vmem>> -> memref<1x32xf32, #tpu.memory_space<vmem>>
    %151 = tpu.memref_slice %arg7[%c1_i32_100] : memref<8x!tpu.dma_semaphore, #tpu.memory_space<semaphore_mem>> -> memref<1x!tpu.dma_semaphore, #tpu.memory_space<semaphore_mem>>
    %152 = tpu.memref_squeeze %151 : memref<1x!tpu.dma_semaphore, #tpu.memory_space<semaphore_mem>> -> memref<!tpu.dma_semaphore, #tpu.memory_space<semaphore_mem>>
    tpu.wait_dma2 semaphore(%152 : memref<!tpu.dma_semaphore, #tpu.memory_space<semaphore_mem>>) src(%149 : memref<1x32xf32, #tpu.memory_space<any>>) dst(%150 : memref<1x32xf32, #tpu.memory_space<vmem>>)
    %c2_i32_104 = arith.constant 2 : i32
    %c0_i32_105 = arith.constant 0 : i32
    %153 = tpu.memref_slice %arg2[%85, %c0_i32_105] : memref<50x32xf32, #tpu.memory_space<any>> -> memref<1x32xf32, #tpu.memory_space<any>>
    %c10_i32_106 = arith.constant 10 : i32
    %c0_i32_107 = arith.constant 0 : i32
    %154 = tpu.memref_slice %arg6[%c10_i32_106, %c0_i32_107] : memref<16x32xf32, #tpu.memory_space<vmem>> -> memref<1x32xf32, #tpu.memory_space<vmem>>
    %155 = tpu.memref_slice %arg7[%c2_i32_104] : memref<8x!tpu.dma_semaphore, #tpu.memory_space<semaphore_mem>> -> memref<1x!tpu.dma_semaphore, #tpu.memory_space<semaphore_mem>>
    %156 = tpu.memref_squeeze %155 : memref<1x!tpu.dma_semaphore, #tpu.memory_space<semaphore_mem>> -> memref<!tpu.dma_semaphore, #tpu.memory_space<semaphore_mem>>
    tpu.wait_dma2 semaphore(%156 : memref<!tpu.dma_semaphore, #tpu.memory_space<semaphore_mem>>) src(%153 : memref<1x32xf32, #tpu.memory_space<any>>) dst(%154 : memref<1x32xf32, #tpu.memory_space<vmem>>)
    %c3_i32_108 = arith.constant 3 : i32
    %c0_i32_109 = arith.constant 0 : i32
    %157 = tpu.memref_slice %arg2[%96, %c0_i32_109] : memref<50x32xf32, #tpu.memory_space<any>> -> memref<1x32xf32, #tpu.memory_space<any>>
    %c11_i32_110 = arith.constant 11 : i32
    %c0_i32_111 = arith.constant 0 : i32
    %158 = tpu.memref_slice %arg6[%c11_i32_110, %c0_i32_111] : memref<16x32xf32, #tpu.memory_space<vmem>> -> memref<1x32xf32, #tpu.memory_space<vmem>>
    %159 = tpu.memref_slice %arg7[%c3_i32_108] : memref<8x!tpu.dma_semaphore, #tpu.memory_space<semaphore_mem>> -> memref<1x!tpu.dma_semaphore, #tpu.memory_space<semaphore_mem>>
    %160 = tpu.memref_squeeze %159 : memref<1x!tpu.dma_semaphore, #tpu.memory_space<semaphore_mem>> -> memref<!tpu.dma_semaphore, #tpu.memory_space<semaphore_mem>>
    tpu.wait_dma2 semaphore(%160 : memref<!tpu.dma_semaphore, #tpu.memory_space<semaphore_mem>>) src(%157 : memref<1x32xf32, #tpu.memory_space<any>>) dst(%158 : memref<1x32xf32, #tpu.memory_space<vmem>>)
    %c4_i32_112 = arith.constant 4 : i32
    %c0_i32_113 = arith.constant 0 : i32
    %161 = tpu.memref_slice %arg2[%107, %c0_i32_113] : memref<50x32xf32, #tpu.memory_space<any>> -> memref<1x32xf32, #tpu.memory_space<any>>
    %c12_i32_114 = arith.constant 12 : i32
    %c0_i32_115 = arith.constant 0 : i32
    %162 = tpu.memref_slice %arg6[%c12_i32_114, %c0_i32_115] : memref<16x32xf32, #tpu.memory_space<vmem>> -> memref<1x32xf32, #tpu.memory_space<vmem>>
    %163 = tpu.memref_slice %arg7[%c4_i32_112] : memref<8x!tpu.dma_semaphore, #tpu.memory_space<semaphore_mem>> -> memref<1x!tpu.dma_semaphore, #tpu.memory_space<semaphore_mem>>
    %164 = tpu.memref_squeeze %163 : memref<1x!tpu.dma_semaphore, #tpu.memory_space<semaphore_mem>> -> memref<!tpu.dma_semaphore, #tpu.memory_space<semaphore_mem>>
    tpu.wait_dma2 semaphore(%164 : memref<!tpu.dma_semaphore, #tpu.memory_space<semaphore_mem>>) src(%161 : memref<1x32xf32, #tpu.memory_space<any>>) dst(%162 : memref<1x32xf32, #tpu.memory_space<vmem>>)
    %c5_i32_116 = arith.constant 5 : i32
    %c0_i32_117 = arith.constant 0 : i32
    %165 = tpu.memref_slice %arg2[%118, %c0_i32_117] : memref<50x32xf32, #tpu.memory_space<any>> -> memref<1x32xf32, #tpu.memory_space<any>>
    %c13_i32_118 = arith.constant 13 : i32
    %c0_i32_119 = arith.constant 0 : i32
    %166 = tpu.memref_slice %arg6[%c13_i32_118, %c0_i32_119] : memref<16x32xf32, #tpu.memory_space<vmem>> -> memref<1x32xf32, #tpu.memory_space<vmem>>
    %167 = tpu.memref_slice %arg7[%c5_i32_116] : memref<8x!tpu.dma_semaphore, #tpu.memory_space<semaphore_mem>> -> memref<1x!tpu.dma_semaphore, #tpu.memory_space<semaphore_mem>>
    %168 = tpu.memref_squeeze %167 : memref<1x!tpu.dma_semaphore, #tpu.memory_space<semaphore_mem>> -> memref<!tpu.dma_semaphore, #tpu.memory_space<semaphore_mem>>
    tpu.wait_dma2 semaphore(%168 : memref<!tpu.dma_semaphore, #tpu.memory_space<semaphore_mem>>) src(%165 : memref<1x32xf32, #tpu.memory_space<any>>) dst(%166 : memref<1x32xf32, #tpu.memory_space<vmem>>)
    %c6_i32_120 = arith.constant 6 : i32
    %c0_i32_121 = arith.constant 0 : i32
    %169 = tpu.memref_slice %arg2[%129, %c0_i32_121] : memref<50x32xf32, #tpu.memory_space<any>> -> memref<1x32xf32, #tpu.memory_space<any>>
    %c14_i32_122 = arith.constant 14 : i32
    %c0_i32_123 = arith.constant 0 : i32
    %170 = tpu.memref_slice %arg6[%c14_i32_122, %c0_i32_123] : memref<16x32xf32, #tpu.memory_space<vmem>> -> memref<1x32xf32, #tpu.memory_space<vmem>>
    %171 = tpu.memref_slice %arg7[%c6_i32_120] : memref<8x!tpu.dma_semaphore, #tpu.memory_space<semaphore_mem>> -> memref<1x!tpu.dma_semaphore, #tpu.memory_space<semaphore_mem>>
    %172 = tpu.memref_squeeze %171 : memref<1x!tpu.dma_semaphore, #tpu.memory_space<semaphore_mem>> -> memref<!tpu.dma_semaphore, #tpu.memory_space<semaphore_mem>>
    tpu.wait_dma2 semaphore(%172 : memref<!tpu.dma_semaphore, #tpu.memory_space<semaphore_mem>>) src(%169 : memref<1x32xf32, #tpu.memory_space<any>>) dst(%170 : memref<1x32xf32, #tpu.memory_space<vmem>>)
    %c7_i32_124 = arith.constant 7 : i32
    %c0_i32_125 = arith.constant 0 : i32
    %173 = tpu.memref_slice %arg2[%140, %c0_i32_125] : memref<50x32xf32, #tpu.memory_space<any>> -> memref<1x32xf32, #tpu.memory_space<any>>
    %c15_i32_126 = arith.constant 15 : i32
    %c0_i32_127 = arith.constant 0 : i32
    %174 = tpu.memref_slice %arg6[%c15_i32_126, %c0_i32_127] : memref<16x32xf32, #tpu.memory_space<vmem>> -> memref<1x32xf32, #tpu.memory_space<vmem>>
    %175 = tpu.memref_slice %arg7[%c7_i32_124] : memref<8x!tpu.dma_semaphore, #tpu.memory_space<semaphore_mem>> -> memref<1x!tpu.dma_semaphore, #tpu.memory_space<semaphore_mem>>
    %176 = tpu.memref_squeeze %175 : memref<1x!tpu.dma_semaphore, #tpu.memory_space<semaphore_mem>> -> memref<!tpu.dma_semaphore, #tpu.memory_space<semaphore_mem>>
    tpu.wait_dma2 semaphore(%176 : memref<!tpu.dma_semaphore, #tpu.memory_space<semaphore_mem>>) src(%173 : memref<1x32xf32, #tpu.memory_space<any>>) dst(%174 : memref<1x32xf32, #tpu.memory_space<vmem>>)
    %c0 = arith.constant 0 : index
    %c0_128 = arith.constant 0 : index
    %177 = vector.load %arg6[%c0, %c0_128] : memref<16x32xf32, #tpu.memory_space<vmem>>, vector<16x32xf32>
    %cst = arith.constant dense<0.000000e+00> : vector<16xf32>
    %178 = vector.multi_reduction <add>, %177, %cst [1] : vector<16x32xf32> to vector<16xf32>
    %179 = vector.shape_cast %178 : vector<16xf32> to vector<16x1xf32>
    %180 = arith.mulf %177, %177 : vector<16x32xf32>
    %cst_129 = arith.constant dense<0.000000e+00> : vector<16xf32>
    %181 = vector.multi_reduction <add>, %180, %cst_129 [1] : vector<16x32xf32> to vector<16xf32>
    %182 = vector.shape_cast %181 : vector<16xf32> to vector<16x1xf32>
    %cst_130 = arith.constant 3.125000e-02 : f32
    %183 = vector.broadcast %cst_130 : f32 to vector<16x1xf32>
    %184 = arith.mulf %179, %183 : vector<16x1xf32>
    %cst_131 = arith.constant 3.125000e-02 : f32
    %185 = vector.broadcast %cst_131 : f32 to vector<16x1xf32>
    %186 = arith.mulf %182, %185 : vector<16x1xf32>
    %187 = arith.mulf %184, %184 : vector<16x1xf32>
    %188 = arith.subf %186, %187 : vector<16x1xf32>
    %cst_132 = arith.constant 0.000000e+00 : f32
    %189 = vector.broadcast %cst_132 : f32 to vector<16x1xf32>
    %190 = arith.maximumf %188, %189 : vector<16x1xf32>
    %cst_133 = arith.constant 9.99999996E-13 : f32
    %191 = vector.broadcast %cst_133 : f32 to vector<16x1xf32>
    %192 = arith.addf %190, %191 : vector<16x1xf32>
    %193 = math.rsqrt %192 : vector<16x1xf32>
    %194 = vector.broadcast %184 : vector<16x1xf32> to vector<16x32xf32>
    %195 = arith.subf %177, %194 : vector<16x32xf32>
    %196 = vector.broadcast %193 : vector<16x1xf32> to vector<16x32xf32>
    %197 = arith.mulf %195, %196 : vector<16x32xf32>
    %c0_134 = arith.constant 0 : index
    %c0_135 = arith.constant 0 : index
    %198 = vector.load %arg3[%c0_134, %c0_135] : memref<1x32xf32, #tpu.memory_space<vmem>>, vector<1x32xf32>
    %199 = vector.broadcast %198 : vector<1x32xf32> to vector<16x32xf32>
    %200 = arith.mulf %197, %199 : vector<16x32xf32>
    %c0_136 = arith.constant 0 : index
    %c0_137 = arith.constant 0 : index
    %201 = vector.load %arg4[%c0_136, %c0_137] : memref<1x32xf32, #tpu.memory_space<vmem>>, vector<1x32xf32>
    %202 = vector.broadcast %201 : vector<1x32xf32> to vector<16x32xf32>
    %203 = arith.addf %200, %202 : vector<16x32xf32>
    %c0_138 = arith.constant 0 : index
    %c0_139 = arith.constant 0 : index
    %204 = vector.load %arg5[%c0_138, %c0_139] : memref<16x32xf32, #tpu.memory_space<vmem>>, vector<16x32xf32>
    tpu.vector_store %arg5[%c0_138, %c0_139], %203 {strides = array<i32>} : memref<16x32xf32, #tpu.memory_space<vmem>>, vector<16x32xf32>,
    return
  }
  func.func @transform_1(%arg0: i32, %arg1: memref<16xi32, #tpu.memory_space<smem>>) -> (i32, i32) {
    %c0_i32 = arith.constant 0 : i32
    %c0_i32_0 = arith.constant 0 : i32
    %c0_i32_1 = arith.constant 0 : i32
    return %c0_i32, %c0_i32_0 : i32, i32
  }
  func.func @transform_2(%arg0: i32, %arg1: memref<16xi32, #tpu.memory_space<smem>>) -> (i32, i32) {
    %c0_i32 = arith.constant 0 : i32
    %c0_i32_0 = arith.constant 0 : i32
    %c0_i32_1 = arith.constant 0 : i32
    return %c0_i32, %c0_i32_0 : i32, i32
  }
  func.func @transform_3(%arg0: i32, %arg1: memref<16xi32, #tpu.memory_space<smem>>) -> (i32, i32) {
    %c0_i32 = arith.constant 0 : i32
    %c0_i32_0 = arith.constant 0 : i32
    return %arg0, %c0_i32 : i32, i32
  }
}

</mosaic_0001>

<llo_original>
// kernel: tpu_custom_call.1
$region0: #{tpu_custom_call.1}
  #allocation0 [shape = 'u32[]', space=smem, size = 0x4, offset = 0x4, fixed_abs, tag = 'smem constant byte address 0x4 - core index']
  #allocation1 [shape = 'u32[144,128]{1,0:T(1,128)}', space=vmem, size = 0x12000, scoped, tag = 'internal scratch']
  #allocation2 [shape = 'f32[16,32]{1,0:T(8,128)}', space=vmem, size = 0x2000, scoped, tag = 'scratch operand']
  #allocation3 [shape = 's32[8]{0}', space=sflag, size = 0x20, scoped, tag = 'scratch operand']
  #allocation4 [shape = 's32[1]{0}', space=sflag, size = 0x4, scoped, tag = 'scoped memory for tpu_custom_call.1']
  #allocation5 [shape = 'u8[512]{0}', space=smem, size = 0x200, scoped, tag = 'prefetched SMEM operand 0']
  #allocation8 [shape = 's32[]', space=sflag, size = 0x4, offset = 0, fixed_abs, tag = 'sflag constant byte address 0x0 - dummy sync flag']
  #allocation9 [shape = 's32[]', space=sflag, size = 0x4, offset = 0, fixed_abs, tag = 'sflag constant byte address 0x0 - dummy sync flag']
  #allocation10 [shape = 's32[]', space=sflag, size = 0x4, offset = 0, fixed_abs, tag = 'sflag constant byte address 0x0 - dummy sync flag']
  #allocation11 [shape = 's32[]', space=sflag, size = 0x4, offset = 0, fixed_abs, tag = 'sflag constant byte address 0x0 - dummy sync flag']
  #allocation12 [shape = 's32[]', space=sflag, size = 0x4, offset = 0, fixed_abs, tag = 'sflag constant byte address 0x0 - dummy sync flag']
  #allocation13 [shape = 's32[]', space=sflag, size = 0x4, offset = 0, fixed_abs, tag = 'sflag constant byte address 0x0 - dummy sync flag']
  #allocation14 [shape = 's32[]', space=sflag, size = 0x4, offset = 0, fixed_abs, tag = 'sflag constant byte address 0x0 - dummy sync flag']
  #allocation15 [shape = 's32[]', space=sflag, size = 0x4, offset = 0, fixed_abs, tag = 'sflag constant byte address 0x0 - dummy sync flag']
  #allocation16 [shape = 's32[]', space=sflag, size = 0x4, offset = 0, fixed_abs, tag = 'sflag constant byte address 0x0 - dummy sync flag']
  #allocation17 [shape = 's32[]', space=sflag, size = 0x4, offset = 0, fixed_abs, tag = 'sflag constant byte address 0x0 - dummy sync flag']
  #allocation18 [shape = 's32[]', space=sflag, size = 0x4, offset = 0, fixed_abs, tag = 'sflag constant byte address 0x0 - dummy sync flag']
  #allocation19 [shape = 's32[]', space=sflag, size = 0x4, offset = 0, fixed_abs, tag = 'sflag constant byte address 0x0 - dummy sync flag']
  #allocation20 [shape = 's32[]', space=sflag, size = 0x4, offset = 0, fixed_abs, tag = 'sflag constant byte address 0x0 - dummy sync flag']
  #allocation21 [shape = 's32[]', space=sflag, size = 0x4, offset = 0, fixed_abs, tag = 'sflag constant byte address 0x0 - dummy sync flag']
  #allocation22 [shape = 's32[]', space=sflag, size = 0x4, offset = 0, fixed_abs, tag = 'sflag constant byte address 0x0 - dummy sync flag']
  #allocation23 [shape = 's32[]', space=sflag, size = 0x4, offset = 0, fixed_abs, tag = 'sflag constant byte address 0x0 - dummy sync flag']
  %s0 = inlined_call_operand.vmem [shape: s32[16], index: 0, kind: input, shape index: {}]
  %s1 = inlined_call_operand.vmem [shape: f32[50,32], index: 1, kind: input, shape index: {}]
  %s2 = inlined_call_operand.vmem [shape: f32[1,32], index: 2, kind: input, shape index: {}]
  %s3 = inlined_call_operand.vmem [shape: f32[1,32], index: 3, kind: input, shape index: {}]
  %s4 = inlined_call_operand.hbm [shape: f32[16,32], index: 4, kind: output, shape index: {}]
  %s5 = sld [smem:[#allocation0]]
  $region498: #{tpu_custom_call.1} parent=0
    _
  %s7 = ssub.s32 1, %s5
  %s8 = scalar_select 0, %s7, %s5
  %s9 = sshll.u32 %s0, 4
  %s10 = int_to_ptr.vmem [resolvable:$true] %s9
  %12 = dma.vmem_to_smem %s10, 16, [#allocation5], [#allocation4]
  %13 = dma.done [#allocation4], 16
  %14 = sfence
  $region1: #{tpu_custom_call.1} parent=0
    #allocation6 [shape = 'u8[8192]{0}', space=vmem, size = 0x2000, scoped, tag = 'output window, operand 0, single buffered']
    #allocation7 [shape = 's32[1]{0}', space=sflag, size = 0x4, scoped, tag = 'scoped memory for tpu_custom_call.1']
    %15 = vsyncpa [#allocation7], 0
    // Predicated region
    $region2: #{tpu_custom_call.1} parent=1 // pred_check
      _
    $region3: #{tpu_custom_call.1} parent=1 // pred_check_branch
      %17 = sbr.rel (0) target = $region5
    $region4: #{tpu_custom_call.1} parent=1 // pred_region
      _
    $region5: #{tpu_custom_call.1} parent=1 // pred_fallthru
      _
    // Predicated region
    $region6: #{tpu_custom_call.1} parent=1 // pred_check
      _
    $region7: #{tpu_custom_call.1} parent=1 // pred_check_branch
      %19 = sbr.rel (0) target = $region9
    $region8: #{tpu_custom_call.1} parent=1 // pred_region
      _
    $region9: #{tpu_custom_call.1} parent=1 // pred_fallthru
      _
    %s20 = smul.u32 0, 16
    %s21 = sld [smem:[#allocation5 + %s20]]
    %s22 = scalar_lea.vmem %s1, %s21
    %p24 = scmp.lt.u32.totalorder 1, 8
    %p25 = pneg %p24
    // Predicated region
    $region10: #{tpu_custom_call.1} parent=1 // pred_check
      _
    $region11: #{tpu_custom_call.1} parent=1 // pred_check_branch
      %27 = sbr.rel (%p24) target = $region13
    $region12: #{tpu_custom_call.1} parent=1 // pred_region
      %s42 = sand.u32 1, 7
      %p43 = scmp.eq.s32.totalorder %s42, 0
      %p44 = pneg %p43
      // Predicated region
      $region25: #{tpu_custom_call.1} parent=12 // pred_check
        _
      $region26: #{tpu_custom_call.1} parent=12 // pred_check_branch
        %46 = sbr.rel (%p43) target = $region28
      $region27: #{tpu_custom_call.1} parent=12 // pred_region
        %s47 = sand.u32 1, 7
        %s48 = ssub.s32 1, %s47
        %s49 = scalar_lea.vmem %s22, %s48
        %s50 = ssub.s32 1, %s47
        %s51 = scalar_lea.vmem [#allocation2], %s50
        %s52 = sshllo.u32 0, %s47
        loop: start=0, step=1, limit=1
        $region29: #{tpu_custom_call.1} parent=27 // loop_pre_header
          _
        $region30: #{tpu_custom_call.1} parent=27 // loop_header
          %s54 = sphi 0, %s58
          %p55 = scmp.ge.s32.totalorder %s54, 1
          %s59 = sphi %s49, %s49
          %s60 = sphi %s51, %s51
        $region31: #{tpu_custom_call.1} parent=27 // loop_header_branch
          %57 = sbr.rel (%p55) target = $region35
        $region32: #{tpu_custom_call.1} parent=27 // loop_body
          %v61 = vld [vmem:[%s59] sm:%s52]
          %62 = vst [vmem:[%s60] sm:%s52] %v61
        $region33: #{tpu_custom_call.1} parent=27 // loop_footer
          %s58 = sadd.s32 1, %s54
        $region34: #{tpu_custom_call.1} parent=27 // loop_footer_branch
          %53 = sbr.rel target = $region30
        $region35: #{tpu_custom_call.1} parent=27 // loop_exit
          _
      $region28: #{tpu_custom_call.1} parent=12 // pred_fallthru
        _
    $region13: #{tpu_custom_call.1} parent=1 // pred_fallthru
      _
    // Predicated region
    $region14: #{tpu_custom_call.1} parent=1 // pred_check
      %p28 = pneg %p24
    $region15: #{tpu_custom_call.1} parent=1 // pred_check_branch
      %30 = sbr.rel (%p28) target = $region17
    $region16: #{tpu_custom_call.1} parent=1 // pred_region
      %s31 = sshllo.u32 0, 1
      loop: start=0, step=1, limit=1
      $region18: #{tpu_custom_call.1} parent=16 // loop_pre_header
        _
      $region19: #{tpu_custom_call.1} parent=16 // loop_header
        %s33 = sphi 0, %s37
        %p34 = scmp.ge.s32.totalorder %s33, 1
        %s38 = sphi %s22, %s22
        %s39 = sphi [#allocation2], [#allocation2]
      $region20: #{tpu_custom_call.1} parent=16 // loop_header_branch
        %36 = sbr.rel (%p34) target = $region24
      $region21: #{tpu_custom_call.1} parent=16 // loop_body
        %v40 = vld [vmem:[%s38] sm:%s31]
        %41 = vst [vmem:[%s39] sm:%s31] %v40
      $region22: #{tpu_custom_call.1} parent=16 // loop_footer
        %s37 = sadd.s32 1, %s33
      $region23: #{tpu_custom_call.1} parent=16 // loop_footer_branch
        %32 = sbr.rel target = $region19
      $region24: #{tpu_custom_call.1} parent=16 // loop_exit
        _
    $region17: #{tpu_custom_call.1} parent=1 // pred_fallthru
      _
    // Predicated region
    $region36: #{tpu_custom_call.1} parent=1 // pred_check
      _
    $region37: #{tpu_custom_call.1} parent=1 // pred_check_branch
      %65 = sbr.rel (0) target = $region39
    $region38: #{tpu_custom_call.1} parent=1 // pred_region
      %66 = vsyncadd [#allocation3], 16
    $region39: #{tpu_custom_call.1} parent=1 // pred_fallthru
      _
    %s67 = sadd.s32 %s20, 1
    %s68 = sld [smem:[#allocation5 + %s67]]
    %s69 = scalar_lea.vmem %s1, %s68
    %s70 = scalar_lea.vmem [#allocation2], 1
    %s71 = scalar_lea.sflag [#allocation3], 1
    %p73 = scmp.lt.u32.totalorder 1, 8
    %p74 = pneg %p73
    // Predicated region
    $region40: #{tpu_custom_call.1} parent=1 // pred_check
      _
    $region41: #{tpu_custom_call.1} parent=1 // pred_check_branch
      %76 = sbr.rel (%p73) target = $region43
    $region42: #{tpu_custom_call.1} parent=1 // pred_region
      %s91 = sand.u32 1, 7
      %p92 = scmp.eq.s32.totalorder %s91, 0
      %p93 = pneg %p92
      // Predicated region
      $region55: #{tpu_custom_call.1} parent=42 // pred_check
        _
      $region56: #{tpu_custom_call.1} parent=42 // pred_check_branch
        %95 = sbr.rel (%p92) target = $region58
      $region57: #{tpu_custom_call.1} parent=42 // pred_region
        %s96 = sand.u32 1, 7
        %s97 = ssub.s32 1, %s96
        %s98 = scalar_lea.vmem %s69, %s97
        %s99 = ssub.s32 1, %s96
        %s100 = scalar_lea.vmem %s70, %s99 [#allocation2]
        %s101 = sshllo.u32 0, %s96
        loop: start=0, step=1, limit=1
        $region59: #{tpu_custom_call.1} parent=57 // loop_pre_header
          _
        $region60: #{tpu_custom_call.1} parent=57 // loop_header
          %s103 = sphi 0, %s107
          %p104 = scmp.ge.s32.totalorder %s103, 1
          %s108 = sphi %s98, %s98
          %s109 = sphi %s100, %s100
        $region61: #{tpu_custom_call.1} parent=57 // loop_header_branch
          %106 = sbr.rel (%p104) target = $region65
        $region62: #{tpu_custom_call.1} parent=57 // loop_body
          %v110 = vld [vmem:[%s108] sm:%s101]
          %111 = vst [vmem:[%s109] sm:%s101] %v110
        $region63: #{tpu_custom_call.1} parent=57 // loop_footer
          %s107 = sadd.s32 1, %s103
        $region64: #{tpu_custom_call.1} parent=57 // loop_footer_branch
          %102 = sbr.rel target = $region60
        $region65: #{tpu_custom_call.1} parent=57 // loop_exit
          _
      $region58: #{tpu_custom_call.1} parent=42 // pred_fallthru
        _
    $region43: #{tpu_custom_call.1} parent=1 // pred_fallthru
      _
    // Predicated region
    $region44: #{tpu_custom_call.1} parent=1 // pred_check
      %p77 = pneg %p73
    $region45: #{tpu_custom_call.1} parent=1 // pred_check_branch
      %79 = sbr.rel (%p77) target = $region47
    $region46: #{tpu_custom_call.1} parent=1 // pred_region
      %s80 = sshllo.u32 0, 1
      loop: start=0, step=1, limit=1
      $region48: #{tpu_custom_call.1} parent=46 // loop_pre_header
        _
      $region49: #{tpu_custom_call.1} parent=46 // loop_header
        %s82 = sphi 0, %s86
        %p83 = scmp.ge.s32.totalorder %s82, 1
        %s87 = sphi %s69, %s69
        %s88 = sphi %s70, %s70
      $region50: #{tpu_custom_call.1} parent=46 // loop_header_branch
        %85 = sbr.rel (%p83) target = $region54
      $region51: #{tpu_custom_call.1} parent=46 // loop_body
        %v89 = vld [vmem:[%s87] sm:%s80]
        %90 = vst [vmem:[%s88] sm:%s80] %v89
      $region52: #{tpu_custom_call.1} parent=46 // loop_footer
        %s86 = sadd.s32 1, %s82
      $region53: #{tpu_custom_call.1} parent=46 // loop_footer_branch
        %81 = sbr.rel target = $region49
      $region54: #{tpu_custom_call.1} parent=46 // loop_exit
        _
    $region47: #{tpu_custom_call.1} parent=1 // pred_fallthru
      _
    // Predicated region
    $region66: #{tpu_custom_call.1} parent=1 // pred_check
      _
    $region67: #{tpu_custom_call.1} parent=1 // pred_check_branch
      %114 = sbr.rel (0) target = $region69
    $region68: #{tpu_custom_call.1} parent=1 // pred_region
      %115 = vsyncadd %s71, 16
    $region69: #{tpu_custom_call.1} parent=1 // pred_fallthru
      _
    %s116 = sadd.s32 %s20, 2
    %s117 = sld [smem:[#allocation5 + %s116]]
    %s118 = scalar_lea.vmem %s1, %s117
    %s119 = scalar_lea.vmem [#allocation2], 2
    %s120 = scalar_lea.sflag [#allocation3], 2
    %p122 = scmp.lt.u32.totalorder 1, 8
    %p123 = pneg %p122
    // Predicated region
    $region70: #{tpu_custom_call.1} parent=1 // pred_check
      _
    $region71: #{tpu_custom_call.1} parent=1 // pred_check_branch
      %125 = sbr.rel (%p122) target = $region73
    $region72: #{tpu_custom_call.1} parent=1 // pred_region
      %s140 = sand.u32 1, 7
      %p141 = scmp.eq.s32.totalorder %s140, 0
      %p142 = pneg %p141
      // Predicated region
      $region85: #{tpu_custom_call.1} parent=72 // pred_check
        _
      $region86: #{tpu_custom_call.1} parent=72 // pred_check_branch
        %144 = sbr.rel (%p141) target = $region88
      $region87: #{tpu_custom_call.1} parent=72 // pred_region
        %s145 = sand.u32 1, 7
        %s146 = ssub.s32 1, %s145
        %s147 = scalar_lea.vmem %s118, %s146
        %s148 = ssub.s32 1, %s145
        %s149 = scalar_lea.vmem %s119, %s148 [#allocation2]
        %s150 = sshllo.u32 0, %s145
        loop: start=0, step=1, limit=1
        $region89: #{tpu_custom_call.1} parent=87 // loop_pre_header
          _
        $region90: #{tpu_custom_call.1} parent=87 // loop_header
          %s152 = sphi 0, %s156
          %p153 = scmp.ge.s32.totalorder %s152, 1
          %s157 = sphi %s147, %s147
          %s158 = sphi %s149, %s149
        $region91: #{tpu_custom_call.1} parent=87 // loop_header_branch
          %155 = sbr.rel (%p153) target = $region95
        $region92: #{tpu_custom_call.1} parent=87 // loop_body
          %v159 = vld [vmem:[%s157] sm:%s150]
          %160 = vst [vmem:[%s158] sm:%s150] %v159
        $region93: #{tpu_custom_call.1} parent=87 // loop_footer
          %s156 = sadd.s32 1, %s152
        $region94: #{tpu_custom_call.1} parent=87 // loop_footer_branch
          %151 = sbr.rel target = $region90
        $region95: #{tpu_custom_call.1} parent=87 // loop_exit
          _
      $region88: #{tpu_custom_call.1} parent=72 // pred_fallthru
        _
    $region73: #{tpu_custom_call.1} parent=1 // pred_fallthru
      _
    // Predicated region
    $region74: #{tpu_custom_call.1} parent=1 // pred_check
      %p126 = pneg %p122
    $region75: #{tpu_custom_call.1} parent=1 // pred_check_branch
      %128 = sbr.rel (%p126) target = $region77
    $region76: #{tpu_custom_call.1} parent=1 // pred_region
      %s129 = sshllo.u32 0, 1
      loop: start=0, step=1, limit=1
      $region78: #{tpu_custom_call.1} parent=76 // loop_pre_header
        _
      $region79: #{tpu_custom_call.1} parent=76 // loop_header
        %s131 = sphi 0, %s135
        %p132 = scmp.ge.s32.totalorder %s131, 1
        %s136 = sphi %s118, %s118
        %s137 = sphi %s119, %s119
      $region80: #{tpu_custom_call.1} parent=76 // loop_header_branch
        %134 = sbr.rel (%p132) target = $region84
      $region81: #{tpu_custom_call.1} parent=76 // loop_body
        %v138 = vld [vmem:[%s136] sm:%s129]
        %139 = vst [vmem:[%s137] sm:%s129] %v138
      $region82: #{tpu_custom_call.1} parent=76 // loop_footer
        %s135 = sadd.s32 1, %s131
      $region83: #{tpu_custom_call.1} parent=76 // loop_footer_branch
        %130 = sbr.rel target = $region79
      $region84: #{tpu_custom_call.1} parent=76 // loop_exit
        _
    $region77: #{tpu_custom_call.1} parent=1 // pred_fallthru
      _
    // Predicated region
    $region96: #{tpu_custom_call.1} parent=1 // pred_check
      _
    $region97: #{tpu_custom_call.1} parent=1 // pred_check_branch
      %163 = sbr.rel (0) target = $region99
    $region98: #{tpu_custom_call.1} parent=1 // pred_region
      %164 = vsyncadd %s120, 16
    $region99: #{tpu_custom_call.1} parent=1 // pred_fallthru
      _
    %s165 = sadd.s32 %s20, 3
    %s166 = sld [smem:[#allocation5 + %s165]]
    %s167 = scalar_lea.vmem %s1, %s166
    %s168 = scalar_lea.vmem [#allocation2], 3
    %s169 = scalar_lea.sflag [#allocation3], 3
    %p171 = scmp.lt.u32.totalorder 1, 8
    %p172 = pneg %p171
    // Predicated region
    $region100: #{tpu_custom_call.1} parent=1 // pred_check
      _
    $region101: #{tpu_custom_call.1} parent=1 // pred_check_branch
      %174 = sbr.rel (%p171) target = $region103
    $region102: #{tpu_custom_call.1} parent=1 // pred_region
      %s189 = sand.u32 1, 7
      %p190 = scmp.eq.s32.totalorder %s189, 0
      %p191 = pneg %p190
      // Predicated region
      $region115: #{tpu_custom_call.1} parent=102 // pred_check
        _
      $region116: #{tpu_custom_call.1} parent=102 // pred_check_branch
        %193 = sbr.rel (%p190) target = $region118
      $region117: #{tpu_custom_call.1} parent=102 // pred_region
        %s194 = sand.u32 1, 7
        %s195 = ssub.s32 1, %s194
        %s196 = scalar_lea.vmem %s167, %s195
        %s197 = ssub.s32 1, %s194
        %s198 = scalar_lea.vmem %s168, %s197 [#allocation2]
        %s199 = sshllo.u32 0, %s194
        loop: start=0, step=1, limit=1
        $region119: #{tpu_custom_call.1} parent=117 // loop_pre_header
          _
        $region120: #{tpu_custom_call.1} parent=117 // loop_header
          %s201 = sphi 0, %s205
          %p202 = scmp.ge.s32.totalorder %s201, 1
          %s206 = sphi %s196, %s196
          %s207 = sphi %s198, %s198
        $region121: #{tpu_custom_call.1} parent=117 // loop_header_branch
          %204 = sbr.rel (%p202) target = $region125
        $region122: #{tpu_custom_call.1} parent=117 // loop_body
          %v208 = vld [vmem:[%s206] sm:%s199]
          %209 = vst [vmem:[%s207] sm:%s199] %v208
        $region123: #{tpu_custom_call.1} parent=117 // loop_footer
          %s205 = sadd.s32 1, %s201
        $region124: #{tpu_custom_call.1} parent=117 // loop_footer_branch
          %200 = sbr.rel target = $region120
        $region125: #{tpu_custom_call.1} parent=117 // loop_exit
          _
      $region118: #{tpu_custom_call.1} parent=102 // pred_fallthru
        _
    $region103: #{tpu_custom_call.1} parent=1 // pred_fallthru
      _
    // Predicated region
    $region104: #{tpu_custom_call.1} parent=1 // pred_check
      %p175 = pneg %p171
    $region105: #{tpu_custom_call.1} parent=1 // pred_check_branch
      %177 = sbr.rel (%p175) target = $region107
    $region106: #{tpu_custom_call.1} parent=1 // pred_region
      %s178 = sshllo.u32 0, 1
      loop: start=0, step=1, limit=1
      $region108: #{tpu_custom_call.1} parent=106 // loop_pre_header
        _
      $region109: #{tpu_custom_call.1} parent=106 // loop_header
        %s180 = sphi 0, %s184
        %p181 = scmp.ge.s32.totalorder %s180, 1
        %s185 = sphi %s167, %s167
        %s186 = sphi %s168, %s168
      $region110: #{tpu_custom_call.1} parent=106 // loop_header_branch
        %183 = sbr.rel (%p181) target = $region114
      $region111: #{tpu_custom_call.1} parent=106 // loop_body
        %v187 = vld [vmem:[%s185] sm:%s178]
        %188 = vst [vmem:[%s186] sm:%s178] %v187
      $region112: #{tpu_custom_call.1} parent=106 // loop_footer
        %s184 = sadd.s32 1, %s180
      $region113: #{tpu_custom_call.1} parent=106 // loop_footer_branch
        %179 = sbr.rel target = $region109
      $region114: #{tpu_custom_call.1} parent=106 // loop_exit
        _
    $region107: #{tpu_custom_call.1} parent=1 // pred_fallthru
      _
    // Predicated region
    $region126: #{tpu_custom_call.1} parent=1 // pred_check
      _
    $region127: #{tpu_custom_call.1} parent=1 // pred_check_branch
      %212 = sbr.rel (0) target = $region129
    $region128: #{tpu_custom_call.1} parent=1 // pred_region
      %213 = vsyncadd %s169, 16
    $region129: #{tpu_custom_call.1} parent=1 // pred_fallthru
      _
    %s214 = sadd.s32 %s20, 4
    %s215 = sld [smem:[#allocation5 + %s214]]
    %s216 = scalar_lea.vmem %s1, %s215
    %s217 = scalar_lea.vmem [#allocation2], 4
    %s218 = scalar_lea.sflag [#allocation3], 4
    %p220 = scmp.lt.u32.totalorder 1, 8
    %p221 = pneg %p220
    // Predicated region
    $region130: #{tpu_custom_call.1} parent=1 // pred_check
      _
    $region131: #{tpu_custom_call.1} parent=1 // pred_check_branch
      %223 = sbr.rel (%p220) target = $region133
    $region132: #{tpu_custom_call.1} parent=1 // pred_region
      %s238 = sand.u32 1, 7
      %p239 = scmp.eq.s32.totalorder %s238, 0
      %p240 = pneg %p239
      // Predicated region
      $region145: #{tpu_custom_call.1} parent=132 // pred_check
        _
      $region146: #{tpu_custom_call.1} parent=132 // pred_check_branch
        %242 = sbr.rel (%p239) target = $region148
      $region147: #{tpu_custom_call.1} parent=132 // pred_region
        %s243 = sand.u32 1, 7
        %s244 = ssub.s32 1, %s243
        %s245 = scalar_lea.vmem %s216, %s244
        %s246 = ssub.s32 1, %s243
        %s247 = scalar_lea.vmem %s217, %s246 [#allocation2]
        %s248 = sshllo.u32 0, %s243
        loop: start=0, step=1, limit=1
        $region149: #{tpu_custom_call.1} parent=147 // loop_pre_header
          _
        $region150: #{tpu_custom_call.1} parent=147 // loop_header
          %s250 = sphi 0, %s254
          %p251 = scmp.ge.s32.totalorder %s250, 1
          %s255 = sphi %s245, %s245
          %s256 = sphi %s247, %s247
        $region151: #{tpu_custom_call.1} parent=147 // loop_header_branch
          %253 = sbr.rel (%p251) target = $region155
        $region152: #{tpu_custom_call.1} parent=147 // loop_body
          %v257 = vld [vmem:[%s255] sm:%s248]
          %258 = vst [vmem:[%s256] sm:%s248] %v257
        $region153: #{tpu_custom_call.1} parent=147 // loop_footer
          %s254 = sadd.s32 1, %s250
        $region154: #{tpu_custom_call.1} parent=147 // loop_footer_branch
          %249 = sbr.rel target = $region150
        $region155: #{tpu_custom_call.1} parent=147 // loop_exit
          _
      $region148: #{tpu_custom_call.1} parent=132 // pred_fallthru
        _
    $region133: #{tpu_custom_call.1} parent=1 // pred_fallthru
      _
    // Predicated region
    $region134: #{tpu_custom_call.1} parent=1 // pred_check
      %p224 = pneg %p220
    $region135: #{tpu_custom_call.1} parent=1 // pred_check_branch
      %226 = sbr.rel (%p224) target = $region137
    $region136: #{tpu_custom_call.1} parent=1 // pred_region
      %s227 = sshllo.u32 0, 1
      loop: start=0, step=1, limit=1
      $region138: #{tpu_custom_call.1} parent=136 // loop_pre_header
        _
      $region139: #{tpu_custom_call.1} parent=136 // loop_header
        %s229 = sphi 0, %s233
        %p230 = scmp.ge.s32.totalorder %s229, 1
        %s234 = sphi %s216, %s216
        %s235 = sphi %s217, %s217
      $region140: #{tpu_custom_call.1} parent=136 // loop_header_branch
        %232 = sbr.rel (%p230) target = $region144
      $region141: #{tpu_custom_call.1} parent=136 // loop_body
        %v236 = vld [vmem:[%s234] sm:%s227]
        %237 = vst [vmem:[%s235] sm:%s227] %v236
      $region142: #{tpu_custom_call.1} parent=136 // loop_footer
        %s233 = sadd.s32 1, %s229
      $region143: #{tpu_custom_call.1} parent=136 // loop_footer_branch
        %228 = sbr.rel target = $region139
      $region144: #{tpu_custom_call.1} parent=136 // loop_exit
        _
    $region137: #{tpu_custom_call.1} parent=1 // pred_fallthru
      _
    // Predicated region
    $region156: #{tpu_custom_call.1} parent=1 // pred_check
      _
    $region157: #{tpu_custom_call.1} parent=1 // pred_check_branch
      %261 = sbr.rel (0) target = $region159
    $region158: #{tpu_custom_call.1} parent=1 // pred_region
      %262 = vsyncadd %s218, 16
    $region159: #{tpu_custom_call.1} parent=1 // pred_fallthru
      _
    %s263 = sadd.s32 %s20, 5
    %s264 = sld [smem:[#allocation5 + %s263]]
    %s265 = scalar_lea.vmem %s1, %s264
    %s266 = scalar_lea.vmem [#allocation2], 5
    %s267 = scalar_lea.sflag [#allocation3], 5
    %p269 = scmp.lt.u32.totalorder 1, 8
    %p270 = pneg %p269
    // Predicated region
    $region160: #{tpu_custom_call.1} parent=1 // pred_check
      _
    $region161: #{tpu_custom_call.1} parent=1 // pred_check_branch
      %272 = sbr.rel (%p269) target = $region163
    $region162: #{tpu_custom_call.1} parent=1 // pred_region
      %s287 = sand.u32 1, 7
      %p288 = scmp.eq.s32.totalorder %s287, 0
      %p289 = pneg %p288
      // Predicated region
      $region175: #{tpu_custom_call.1} parent=162 // pred_check
        _
      $region176: #{tpu_custom_call.1} parent=162 // pred_check_branch
        %291 = sbr.rel (%p288) target = $region178
      $region177: #{tpu_custom_call.1} parent=162 // pred_region
        %s292 = sand.u32 1, 7
        %s293 = ssub.s32 1, %s292
        %s294 = scalar_lea.vmem %s265, %s293
        %s295 = ssub.s32 1, %s292
        %s296 = scalar_lea.vmem %s266, %s295 [#allocation2]
        %s297 = sshllo.u32 0, %s292
        loop: start=0, step=1, limit=1
        $region179: #{tpu_custom_call.1} parent=177 // loop_pre_header
          _
        $region180: #{tpu_custom_call.1} parent=177 // loop_header
          %s299 = sphi 0, %s303
          %p300 = scmp.ge.s32.totalorder %s299, 1
          %s304 = sphi %s294, %s294
          %s305 = sphi %s296, %s296
        $region181: #{tpu_custom_call.1} parent=177 // loop_header_branch
          %302 = sbr.rel (%p300) target = $region185
        $region182: #{tpu_custom_call.1} parent=177 // loop_body
          %v306 = vld [vmem:[%s304] sm:%s297]
          %307 = vst [vmem:[%s305] sm:%s297] %v306
        $region183: #{tpu_custom_call.1} parent=177 // loop_footer
          %s303 = sadd.s32 1, %s299
        $region184: #{tpu_custom_call.1} parent=177 // loop_footer_branch
          %298 = sbr.rel target = $region180
        $region185: #{tpu_custom_call.1} parent=177 // loop_exit
          _
      $region178: #{tpu_custom_call.1} parent=162 // pred_fallthru
        _
    $region163: #{tpu_custom_call.1} parent=1 // pred_fallthru
      _
    // Predicated region
    $region164: #{tpu_custom_call.1} parent=1 // pred_check
      %p273 = pneg %p269
    $region165: #{tpu_custom_call.1} parent=1 // pred_check_branch
      %275 = sbr.rel (%p273) target = $region167
    $region166: #{tpu_custom_call.1} parent=1 // pred_region
      %s276 = sshllo.u32 0, 1
      loop: start=0, step=1, limit=1
      $region168: #{tpu_custom_call.1} parent=166 // loop_pre_header
        _
      $region169: #{tpu_custom_call.1} parent=166 // loop_header
        %s278 = sphi 0, %s282
        %p279 = scmp.ge.s32.totalorder %s278, 1
        %s283 = sphi %s265, %s265
        %s284 = sphi %s266, %s266
      $region170: #{tpu_custom_call.1} parent=166 // loop_header_branch
        %281 = sbr.rel (%p279) target = $region174
      $region171: #{tpu_custom_call.1} parent=166 // loop_body
        %v285 = vld [vmem:[%s283] sm:%s276]
        %286 = vst [vmem:[%s284] sm:%s276] %v285
      $region172: #{tpu_custom_call.1} parent=166 // loop_footer
        %s282 = sadd.s32 1, %s278
      $region173: #{tpu_custom_call.1} parent=166 // loop_footer_branch
        %277 = sbr.rel target = $region169
      $region174: #{tpu_custom_call.1} parent=166 // loop_exit
        _
    $region167: #{tpu_custom_call.1} parent=1 // pred_fallthru
      _
    // Predicated region
    $region186: #{tpu_custom_call.1} parent=1 // pred_check
      _
    $region187: #{tpu_custom_call.1} parent=1 // pred_check_branch
      %310 = sbr.rel (0) target = $region189
    $region188: #{tpu_custom_call.1} parent=1 // pred_region
      %311 = vsyncadd %s267, 16
    $region189: #{tpu_custom_call.1} parent=1 // pred_fallthru
      _
    %s312 = sadd.s32 %s20, 6
    %s313 = sld [smem:[#allocation5 + %s312]]
    %s314 = scalar_lea.vmem %s1, %s313
    %s315 = scalar_lea.vmem [#allocation2], 6
    %s316 = scalar_lea.sflag [#allocation3], 6
    %p318 = scmp.lt.u32.totalorder 1, 8
    %p319 = pneg %p318
    // Predicated region
    $region190: #{tpu_custom_call.1} parent=1 // pred_check
      _
    $region191: #{tpu_custom_call.1} parent=1 // pred_check_branch
      %321 = sbr.rel (%p318) target = $region193
    $region192: #{tpu_custom_call.1} parent=1 // pred_region
      %s336 = sand.u32 1, 7
      %p337 = scmp.eq.s32.totalorder %s336, 0
      %p338 = pneg %p337
      // Predicated region
      $region205: #{tpu_custom_call.1} parent=192 // pred_check
        _
      $region206: #{tpu_custom_call.1} parent=192 // pred_check_branch
        %340 = sbr.rel (%p337) target = $region208
      $region207: #{tpu_custom_call.1} parent=192 // pred_region
        %s341 = sand.u32 1, 7
        %s342 = ssub.s32 1, %s341
        %s343 = scalar_lea.vmem %s314, %s342
        %s344 = ssub.s32 1, %s341
        %s345 = scalar_lea.vmem %s315, %s344 [#allocation2]
        %s346 = sshllo.u32 0, %s341
        loop: start=0, step=1, limit=1
        $region209: #{tpu_custom_call.1} parent=207 // loop_pre_header
          _
        $region210: #{tpu_custom_call.1} parent=207 // loop_header
          %s348 = sphi 0, %s352
          %p349 = scmp.ge.s32.totalorder %s348, 1
          %s353 = sphi %s343, %s343
          %s354 = sphi %s345, %s345
        $region211: #{tpu_custom_call.1} parent=207 // loop_header_branch
          %351 = sbr.rel (%p349) target = $region215
        $region212: #{tpu_custom_call.1} parent=207 // loop_body
          %v355 = vld [vmem:[%s353] sm:%s346]
          %356 = vst [vmem:[%s354] sm:%s346] %v355
        $region213: #{tpu_custom_call.1} parent=207 // loop_footer
          %s352 = sadd.s32 1, %s348
        $region214: #{tpu_custom_call.1} parent=207 // loop_footer_branch
          %347 = sbr.rel target = $region210
        $region215: #{tpu_custom_call.1} parent=207 // loop_exit
          _
      $region208: #{tpu_custom_call.1} parent=192 // pred_fallthru
        _
    $region193: #{tpu_custom_call.1} parent=1 // pred_fallthru
      _
    // Predicated region
    $region194: #{tpu_custom_call.1} parent=1 // pred_check
      %p322 = pneg %p318
    $region195: #{tpu_custom_call.1} parent=1 // pred_check_branch
      %324 = sbr.rel (%p322) target = $region197
    $region196: #{tpu_custom_call.1} parent=1 // pred_region
      %s325 = sshllo.u32 0, 1
      loop: start=0, step=1, limit=1
      $region198: #{tpu_custom_call.1} parent=196 // loop_pre_header
        _
      $region199: #{tpu_custom_call.1} parent=196 // loop_header
        %s327 = sphi 0, %s331
        %p328 = scmp.ge.s32.totalorder %s327, 1
        %s332 = sphi %s314, %s314
        %s333 = sphi %s315, %s315
      $region200: #{tpu_custom_call.1} parent=196 // loop_header_branch
        %330 = sbr.rel (%p328) target = $region204
      $region201: #{tpu_custom_call.1} parent=196 // loop_body
        %v334 = vld [vmem:[%s332] sm:%s325]
        %335 = vst [vmem:[%s333] sm:%s325] %v334
      $region202: #{tpu_custom_call.1} parent=196 // loop_footer
        %s331 = sadd.s32 1, %s327
      $region203: #{tpu_custom_call.1} parent=196 // loop_footer_branch
        %326 = sbr.rel target = $region199
      $region204: #{tpu_custom_call.1} parent=196 // loop_exit
        _
    $region197: #{tpu_custom_call.1} parent=1 // pred_fallthru
      _
    // Predicated region
    $region216: #{tpu_custom_call.1} parent=1 // pred_check
      _
    $region217: #{tpu_custom_call.1} parent=1 // pred_check_branch
      %359 = sbr.rel (0) target = $region219
    $region218: #{tpu_custom_call.1} parent=1 // pred_region
      %360 = vsyncadd %s316, 16
    $region219: #{tpu_custom_call.1} parent=1 // pred_fallthru
      _
    %s361 = sadd.s32 %s20, 7
    %s362 = sld [smem:[#allocation5 + %s361]]
    %s363 = scalar_lea.vmem %s1, %s362
    %s364 = scalar_lea.vmem [#allocation2], 7
    %s365 = scalar_lea.sflag [#allocation3], 7
    %p367 = scmp.lt.u32.totalorder 1, 8
    %p368 = pneg %p367
    // Predicated region
    $region220: #{tpu_custom_call.1} parent=1 // pred_check
      _
    $region221: #{tpu_custom_call.1} parent=1 // pred_check_branch
      %370 = sbr.rel (%p367) target = $region223
    $region222: #{tpu_custom_call.1} parent=1 // pred_region
      %s385 = sand.u32 1, 7
      %p386 = scmp.eq.s32.totalorder %s385, 0
      %p387 = pneg %p386
      // Predicated region
      $region235: #{tpu_custom_call.1} parent=222 // pred_check
        _
      $region236: #{tpu_custom_call.1} parent=222 // pred_check_branch
        %389 = sbr.rel (%p386) target = $region238
      $region237: #{tpu_custom_call.1} parent=222 // pred_region
        %s390 = sand.u32 1, 7
        %s391 = ssub.s32 1, %s390
        %s392 = scalar_lea.vmem %s363, %s391
        %s393 = ssub.s32 1, %s390
        %s394 = scalar_lea.vmem %s364, %s393 [#allocation2]
        %s395 = sshllo.u32 0, %s390
        loop: start=0, step=1, limit=1
        $region239: #{tpu_custom_call.1} parent=237 // loop_pre_header
          _
        $region240: #{tpu_custom_call.1} parent=237 // loop_header
          %s397 = sphi 0, %s401
          %p398 = scmp.ge.s32.totalorder %s397, 1
          %s402 = sphi %s392, %s392
          %s403 = sphi %s394, %s394
        $region241: #{tpu_custom_call.1} parent=237 // loop_header_branch
          %400 = sbr.rel (%p398) target = $region245
        $region242: #{tpu_custom_call.1} parent=237 // loop_body
          %v404 = vld [vmem:[%s402] sm:%s395]
          %405 = vst [vmem:[%s403] sm:%s395] %v404
        $region243: #{tpu_custom_call.1} parent=237 // loop_footer
          %s401 = sadd.s32 1, %s397
        $region244: #{tpu_custom_call.1} parent=237 // loop_footer_branch
          %396 = sbr.rel target = $region240
        $region245: #{tpu_custom_call.1} parent=237 // loop_exit
          _
      $region238: #{tpu_custom_call.1} parent=222 // pred_fallthru
        _
    $region223: #{tpu_custom_call.1} parent=1 // pred_fallthru
      _
    // Predicated region
    $region224: #{tpu_custom_call.1} parent=1 // pred_check
      %p371 = pneg %p367
    $region225: #{tpu_custom_call.1} parent=1 // pred_check_branch
      %373 = sbr.rel (%p371) target = $region227
    $region226: #{tpu_custom_call.1} parent=1 // pred_region
      %s374 = sshllo.u32 0, 1
      loop: start=0, step=1, limit=1
      $region228: #{tpu_custom_call.1} parent=226 // loop_pre_header
        _
      $region229: #{tpu_custom_call.1} parent=226 // loop_header
        %s376 = sphi 0, %s380
        %p377 = scmp.ge.s32.totalorder %s376, 1
        %s381 = sphi %s363, %s363
        %s382 = sphi %s364, %s364
      $region230: #{tpu_custom_call.1} parent=226 // loop_header_branch
        %379 = sbr.rel (%p377) target = $region234
      $region231: #{tpu_custom_call.1} parent=226 // loop_body
        %v383 = vld [vmem:[%s381] sm:%s374]
        %384 = vst [vmem:[%s382] sm:%s374] %v383
      $region232: #{tpu_custom_call.1} parent=226 // loop_footer
        %s380 = sadd.s32 1, %s376
      $region233: #{tpu_custom_call.1} parent=226 // loop_footer_branch
        %375 = sbr.rel target = $region229
      $region234: #{tpu_custom_call.1} parent=226 // loop_exit
        _
    $region227: #{tpu_custom_call.1} parent=1 // pred_fallthru
      _
    // Predicated region
    $region246: #{tpu_custom_call.1} parent=1 // pred_check
      _
    $region247: #{tpu_custom_call.1} parent=1 // pred_check_branch
      %408 = sbr.rel (0) target = $region249
    $region248: #{tpu_custom_call.1} parent=1 // pred_region
      %409 = vsyncadd %s365, 16
    $region249: #{tpu_custom_call.1} parent=1 // pred_fallthru
      _
    %s410 = smul.u32 1, 1
    %s411 = sshll.u32 %s410, 4
    %412 = dma.done [#allocation3], %s411
    %s413 = sadd.s32 %s20, 8
    %s414 = sld [smem:[#allocation5 + %s413]]
    %s415 = scalar_lea.vmem %s1, %s414
    %s416 = scalar_lea.vmem [#allocation2], 8
    %p418 = scmp.lt.u32.totalorder 1, 8
    %p419 = pneg %p418
    // Predicated region
    $region250: #{tpu_custom_call.1} parent=1 // pred_check
      _
    $region251: #{tpu_custom_call.1} parent=1 // pred_check_branch
      %421 = sbr.rel (%p418) target = $region253
    $region252: #{tpu_custom_call.1} parent=1 // pred_region
      %s436 = sand.u32 1, 7
      %p437 = scmp.eq.s32.totalorder %s436, 0
      %p438 = pneg %p437
      // Predicated region
      $region265: #{tpu_custom_call.1} parent=252 // pred_check
        _
      $region266: #{tpu_custom_call.1} parent=252 // pred_check_branch
        %440 = sbr.rel (%p437) target = $region268
      $region267: #{tpu_custom_call.1} parent=252 // pred_region
        %s441 = sand.u32 1, 7
        %s442 = ssub.s32 1, %s441
        %s443 = scalar_lea.vmem %s415, %s442
        %s444 = ssub.s32 1, %s441
        %s445 = scalar_lea.vmem %s416, %s444 [#allocation2]
        %s446 = sshllo.u32 0, %s441
        loop: start=0, step=1, limit=1
        $region269: #{tpu_custom_call.1} parent=267 // loop_pre_header
          _
        $region270: #{tpu_custom_call.1} parent=267 // loop_header
          %s448 = sphi 0, %s452
          %p449 = scmp.ge.s32.totalorder %s448, 1
          %s453 = sphi %s443, %s443
          %s454 = sphi %s445, %s445
        $region271: #{tpu_custom_call.1} parent=267 // loop_header_branch
          %451 = sbr.rel (%p449) target = $region275
        $region272: #{tpu_custom_call.1} parent=267 // loop_body
          %v455 = vld [vmem:[%s453] sm:%s446]
          %456 = vst [vmem:[%s454] sm:%s446] %v455
        $region273: #{tpu_custom_call.1} parent=267 // loop_footer
          %s452 = sadd.s32 1, %s448
        $region274: #{tpu_custom_call.1} parent=267 // loop_footer_branch
          %447 = sbr.rel target = $region270
        $region275: #{tpu_custom_call.1} parent=267 // loop_exit
          _
      $region268: #{tpu_custom_call.1} parent=252 // pred_fallthru
        _
    $region253: #{tpu_custom_call.1} parent=1 // pred_fallthru
      _
    // Predicated region
    $region254: #{tpu_custom_call.1} parent=1 // pred_check
      %p422 = pneg %p418
    $region255: #{tpu_custom_call.1} parent=1 // pred_check_branch
      %424 = sbr.rel (%p422) target = $region257
    $region256: #{tpu_custom_call.1} parent=1 // pred_region
      %s425 = sshllo.u32 0, 1
      loop: start=0, step=1, limit=1
      $region258: #{tpu_custom_call.1} parent=256 // loop_pre_header
        _
      $region259: #{tpu_custom_call.1} parent=256 // loop_header
        %s427 = sphi 0, %s431
        %p428 = scmp.ge.s32.totalorder %s427, 1
        %s432 = sphi %s415, %s415
        %s433 = sphi %s416, %s416
      $region260: #{tpu_custom_call.1} parent=256 // loop_header_branch
        %430 = sbr.rel (%p428) target = $region264
      $region261: #{tpu_custom_call.1} parent=256 // loop_body
        %v434 = vld [vmem:[%s432] sm:%s425]
        %435 = vst [vmem:[%s433] sm:%s425] %v434
      $region262: #{tpu_custom_call.1} parent=256 // loop_footer
        %s431 = sadd.s32 1, %s427
      $region263: #{tpu_custom_call.1} parent=256 // loop_footer_branch
        %426 = sbr.rel target = $region259
      $region264: #{tpu_custom_call.1} parent=256 // loop_exit
        _
    $region257: #{tpu_custom_call.1} parent=1 // pred_fallthru
      _
    // Predicated region
    $region276: #{tpu_custom_call.1} parent=1 // pred_check
      _
    $region277: #{tpu_custom_call.1} parent=1 // pred_check_branch
      %459 = sbr.rel (0) target = $region279
    $region278: #{tpu_custom_call.1} parent=1 // pred_region
      %460 = vsyncadd [#allocation3], 16
    $region279: #{tpu_custom_call.1} parent=1 // pred_fallthru
      _
    %s461 = sshll.u32 %s410, 4
    %462 = dma.done %s71, %s461
    %s463 = sadd.s32 %s20, 9
    %s464 = sld [smem:[#allocation5 + %s463]]
    %s465 = scalar_lea.vmem %s1, %s464
    %s466 = scalar_lea.vmem [#allocation2], 9
    %p468 = scmp.lt.u32.totalorder 1, 8
    %p469 = pneg %p468
    // Predicated region
    $region280: #{tpu_custom_call.1} parent=1 // pred_check
      _
    $region281: #{tpu_custom_call.1} parent=1 // pred_check_branch
      %471 = sbr.rel (%p468) target = $region283
    $region282: #{tpu_custom_call.1} parent=1 // pred_region
      %s486 = sand.u32 1, 7
      %p487 = scmp.eq.s32.totalorder %s486, 0
      %p488 = pneg %p487
      // Predicated region
      $region295: #{tpu_custom_call.1} parent=282 // pred_check
        _
      $region296: #{tpu_custom_call.1} parent=282 // pred_check_branch
        %490 = sbr.rel (%p487) target = $region298
      $region297: #{tpu_custom_call.1} parent=282 // pred_region
        %s491 = sand.u32 1, 7
        %s492 = ssub.s32 1, %s491
        %s493 = scalar_lea.vmem %s465, %s492
        %s494 = ssub.s32 1, %s491
        %s495 = scalar_lea.vmem %s466, %s494 [#allocation2]
        %s496 = sshllo.u32 0, %s491
        loop: start=0, step=1, limit=1
        $region299: #{tpu_custom_call.1} parent=297 // loop_pre_header
          _
        $region300: #{tpu_custom_call.1} parent=297 // loop_header
          %s498 = sphi 0, %s502
          %p499 = scmp.ge.s32.totalorder %s498, 1
          %s503 = sphi %s493, %s493
          %s504 = sphi %s495, %s495
        $region301: #{tpu_custom_call.1} parent=297 // loop_header_branch
          %501 = sbr.rel (%p499) target = $region305
        $region302: #{tpu_custom_call.1} parent=297 // loop_body
          %v505 = vld [vmem:[%s503] sm:%s496]
          %506 = vst [vmem:[%s504] sm:%s496] %v505
        $region303: #{tpu_custom_call.1} parent=297 // loop_footer
          %s502 = sadd.s32 1, %s498
        $region304: #{tpu_custom_call.1} parent=297 // loop_footer_branch
          %497 = sbr.rel target = $region300
        $region305: #{tpu_custom_call.1} parent=297 // loop_exit
          _
      $region298: #{tpu_custom_call.1} parent=282 // pred_fallthru
        _
    $region283: #{tpu_custom_call.1} parent=1 // pred_fallthru
      _
    // Predicated region
    $region284: #{tpu_custom_call.1} parent=1 // pred_check
      %p472 = pneg %p468
    $region285: #{tpu_custom_call.1} parent=1 // pred_check_branch
      %474 = sbr.rel (%p472) target = $region287
    $region286: #{tpu_custom_call.1} parent=1 // pred_region
      %s475 = sshllo.u32 0, 1
      loop: start=0, step=1, limit=1
      $region288: #{tpu_custom_call.1} parent=286 // loop_pre_header
        _
      $region289: #{tpu_custom_call.1} parent=286 // loop_header
        %s477 = sphi 0, %s481
        %p478 = scmp.ge.s32.totalorder %s477, 1
        %s482 = sphi %s465, %s465
        %s483 = sphi %s466, %s466
      $region290: #{tpu_custom_call.1} parent=286 // loop_header_branch
        %480 = sbr.rel (%p478) target = $region294
      $region291: #{tpu_custom_call.1} parent=286 // loop_body
        %v484 = vld [vmem:[%s482] sm:%s475]
        %485 = vst [vmem:[%s483] sm:%s475] %v484
      $region292: #{tpu_custom_call.1} parent=286 // loop_footer
        %s481 = sadd.s32 1, %s477
      $region293: #{tpu_custom_call.1} parent=286 // loop_footer_branch
        %476 = sbr.rel target = $region289
      $region294: #{tpu_custom_call.1} parent=286 // loop_exit
        _
    $region287: #{tpu_custom_call.1} parent=1 // pred_fallthru
      _
    // Predicated region
    $region306: #{tpu_custom_call.1} parent=1 // pred_check
      _
    $region307: #{tpu_custom_call.1} parent=1 // pred_check_branch
      %509 = sbr.rel (0) target = $region309
    $region308: #{tpu_custom_call.1} parent=1 // pred_region
      %510 = vsyncadd %s71, 16
    $region309: #{tpu_custom_call.1} parent=1 // pred_fallthru
      _
    %s511 = sshll.u32 %s410, 4
    %512 = dma.done %s120, %s511
    %s513 = sadd.s32 %s20, 10
    %s514 = sld [smem:[#allocation5 + %s513]]
    %s515 = scalar_lea.vmem %s1, %s514
    %s516 = scalar_lea.vmem [#allocation2], 10
    %p518 = scmp.lt.u32.totalorder 1, 8
    %p519 = pneg %p518
    // Predicated region
    $region310: #{tpu_custom_call.1} parent=1 // pred_check
      _
    $region311: #{tpu_custom_call.1} parent=1 // pred_check_branch
      %521 = sbr.rel (%p518) target = $region313
    $region312: #{tpu_custom_call.1} parent=1 // pred_region
      %s536 = sand.u32 1, 7
      %p537 = scmp.eq.s32.totalorder %s536, 0
      %p538 = pneg %p537
      // Predicated region
      $region325: #{tpu_custom_call.1} parent=312 // pred_check
        _
      $region326: #{tpu_custom_call.1} parent=312 // pred_check_branch
        %540 = sbr.rel (%p537) target = $region328
      $region327: #{tpu_custom_call.1} parent=312 // pred_region
        %s541 = sand.u32 1, 7
        %s542 = ssub.s32 1, %s541
        %s543 = scalar_lea.vmem %s515, %s542
        %s544 = ssub.s32 1, %s541
        %s545 = scalar_lea.vmem %s516, %s544 [#allocation2]
        %s546 = sshllo.u32 0, %s541
        loop: start=0, step=1, limit=1
        $region329: #{tpu_custom_call.1} parent=327 // loop_pre_header
          _
        $region330: #{tpu_custom_call.1} parent=327 // loop_header
          %s548 = sphi 0, %s552
          %p549 = scmp.ge.s32.totalorder %s548, 1
          %s553 = sphi %s543, %s543
          %s554 = sphi %s545, %s545
        $region331: #{tpu_custom_call.1} parent=327 // loop_header_branch
          %551 = sbr.rel (%p549) target = $region335
        $region332: #{tpu_custom_call.1} parent=327 // loop_body
          %v555 = vld [vmem:[%s553] sm:%s546]
          %556 = vst [vmem:[%s554] sm:%s546] %v555
        $region333: #{tpu_custom_call.1} parent=327 // loop_footer
          %s552 = sadd.s32 1, %s548
        $region334: #{tpu_custom_call.1} parent=327 // loop_footer_branch
          %547 = sbr.rel target = $region330
        $region335: #{tpu_custom_call.1} parent=327 // loop_exit
          _
      $region328: #{tpu_custom_call.1} parent=312 // pred_fallthru
        _
    $region313: #{tpu_custom_call.1} parent=1 // pred_fallthru
      _
    // Predicated region
    $region314: #{tpu_custom_call.1} parent=1 // pred_check
      %p522 = pneg %p518
    $region315: #{tpu_custom_call.1} parent=1 // pred_check_branch
      %524 = sbr.rel (%p522) target = $region317
    $region316: #{tpu_custom_call.1} parent=1 // pred_region
      %s525 = sshllo.u32 0, 1
      loop: start=0, step=1, limit=1
      $region318: #{tpu_custom_call.1} parent=316 // loop_pre_header
        _
      $region319: #{tpu_custom_call.1} parent=316 // loop_header
        %s527 = sphi 0, %s531
        %p528 = scmp.ge.s32.totalorder %s527, 1
        %s532 = sphi %s515, %s515
        %s533 = sphi %s516, %s516
      $region320: #{tpu_custom_call.1} parent=316 // loop_header_branch
        %530 = sbr.rel (%p528) target = $region324
      $region321: #{tpu_custom_call.1} parent=316 // loop_body
        %v534 = vld [vmem:[%s532] sm:%s525]
        %535 = vst [vmem:[%s533] sm:%s525] %v534
      $region322: #{tpu_custom_call.1} parent=316 // loop_footer
        %s531 = sadd.s32 1, %s527
      $region323: #{tpu_custom_call.1} parent=316 // loop_footer_branch
        %526 = sbr.rel target = $region319
      $region324: #{tpu_custom_call.1} parent=316 // loop_exit
        _
    $region317: #{tpu_custom_call.1} parent=1 // pred_fallthru
      _
    // Predicated region
    $region336: #{tpu_custom_call.1} parent=1 // pred_check
      _
    $region337: #{tpu_custom_call.1} parent=1 // pred_check_branch
      %559 = sbr.rel (0) target = $region339
    $region338: #{tpu_custom_call.1} parent=1 // pred_region
      %560 = vsyncadd %s120, 16
    $region339: #{tpu_custom_call.1} parent=1 // pred_fallthru
      _
    %s561 = sshll.u32 %s410, 4
    %562 = dma.done %s169, %s561
    %s563 = sadd.s32 %s20, 11
    %s564 = sld [smem:[#allocation5 + %s563]]
    %s565 = scalar_lea.vmem %s1, %s564
    %s566 = scalar_lea.vmem [#allocation2], 11
    %p568 = scmp.lt.u32.totalorder 1, 8
    %p569 = pneg %p568
    // Predicated region
    $region340: #{tpu_custom_call.1} parent=1 // pred_check
      _
    $region341: #{tpu_custom_call.1} parent=1 // pred_check_branch
      %571 = sbr.rel (%p568) target = $region343
    $region342: #{tpu_custom_call.1} parent=1 // pred_region
      %s586 = sand.u32 1, 7
      %p587 = scmp.eq.s32.totalorder %s586, 0
      %p588 = pneg %p587
      // Predicated region
      $region355: #{tpu_custom_call.1} parent=342 // pred_check
        _
      $region356: #{tpu_custom_call.1} parent=342 // pred_check_branch
        %590 = sbr.rel (%p587) target = $region358
      $region357: #{tpu_custom_call.1} parent=342 // pred_region
        %s591 = sand.u32 1, 7
        %s592 = ssub.s32 1, %s591
        %s593 = scalar_lea.vmem %s565, %s592
        %s594 = ssub.s32 1, %s591
        %s595 = scalar_lea.vmem %s566, %s594 [#allocation2]
        %s596 = sshllo.u32 0, %s591
        loop: start=0, step=1, limit=1
        $region359: #{tpu_custom_call.1} parent=357 // loop_pre_header
          _
        $region360: #{tpu_custom_call.1} parent=357 // loop_header
          %s598 = sphi 0, %s602
          %p599 = scmp.ge.s32.totalorder %s598, 1
          %s603 = sphi %s593, %s593
          %s604 = sphi %s595, %s595
        $region361: #{tpu_custom_call.1} parent=357 // loop_header_branch
          %601 = sbr.rel (%p599) target = $region365
        $region362: #{tpu_custom_call.1} parent=357 // loop_body
          %v605 = vld [vmem:[%s603] sm:%s596]
          %606 = vst [vmem:[%s604] sm:%s596] %v605
        $region363: #{tpu_custom_call.1} parent=357 // loop_footer
          %s602 = sadd.s32 1, %s598
        $region364: #{tpu_custom_call.1} parent=357 // loop_footer_branch
          %597 = sbr.rel target = $region360
        $region365: #{tpu_custom_call.1} parent=357 // loop_exit
          _
      $region358: #{tpu_custom_call.1} parent=342 // pred_fallthru
        _
    $region343: #{tpu_custom_call.1} parent=1 // pred_fallthru
      _
    // Predicated region
    $region344: #{tpu_custom_call.1} parent=1 // pred_check
      %p572 = pneg %p568
    $region345: #{tpu_custom_call.1} parent=1 // pred_check_branch
      %574 = sbr.rel (%p572) target = $region347
    $region346: #{tpu_custom_call.1} parent=1 // pred_region
      %s575 = sshllo.u32 0, 1
      loop: start=0, step=1, limit=1
      $region348: #{tpu_custom_call.1} parent=346 // loop_pre_header
        _
      $region349: #{tpu_custom_call.1} parent=346 // loop_header
        %s577 = sphi 0, %s581
        %p578 = scmp.ge.s32.totalorder %s577, 1
        %s582 = sphi %s565, %s565
        %s583 = sphi %s566, %s566
      $region350: #{tpu_custom_call.1} parent=346 // loop_header_branch
        %580 = sbr.rel (%p578) target = $region354
      $region351: #{tpu_custom_call.1} parent=346 // loop_body
        %v584 = vld [vmem:[%s582] sm:%s575]
        %585 = vst [vmem:[%s583] sm:%s575] %v584
      $region352: #{tpu_custom_call.1} parent=346 // loop_footer
        %s581 = sadd.s32 1, %s577
      $region353: #{tpu_custom_call.1} parent=346 // loop_footer_branch
        %576 = sbr.rel target = $region349
      $region354: #{tpu_custom_call.1} parent=346 // loop_exit
        _
    $region347: #{tpu_custom_call.1} parent=1 // pred_fallthru
      _
    // Predicated region
    $region366: #{tpu_custom_call.1} parent=1 // pred_check
      _
    $region367: #{tpu_custom_call.1} parent=1 // pred_check_branch
      %609 = sbr.rel (0) target = $region369
    $region368: #{tpu_custom_call.1} parent=1 // pred_region
      %610 = vsyncadd %s169, 16
    $region369: #{tpu_custom_call.1} parent=1 // pred_fallthru
      _
    %s611 = sshll.u32 %s410, 4
    %612 = dma.done %s218, %s611
    %s613 = sadd.s32 %s20, 12
    %s614 = sld [smem:[#allocation5 + %s613]]
    %s615 = scalar_lea.vmem %s1, %s614
    %s616 = scalar_lea.vmem [#allocation2], 12
    %p618 = scmp.lt.u32.totalorder 1, 8
    %p619 = pneg %p618
    // Predicated region
    $region370: #{tpu_custom_call.1} parent=1 // pred_check
      _
    $region371: #{tpu_custom_call.1} parent=1 // pred_check_branch
      %621 = sbr.rel (%p618) target = $region373
    $region372: #{tpu_custom_call.1} parent=1 // pred_region
      %s636 = sand.u32 1, 7
      %p637 = scmp.eq.s32.totalorder %s636, 0
      %p638 = pneg %p637
      // Predicated region
      $region385: #{tpu_custom_call.1} parent=372 // pred_check
        _
      $region386: #{tpu_custom_call.1} parent=372 // pred_check_branch
        %640 = sbr.rel (%p637) target = $region388
      $region387: #{tpu_custom_call.1} parent=372 // pred_region
        %s641 = sand.u32 1, 7
        %s642 = ssub.s32 1, %s641
        %s643 = scalar_lea.vmem %s615, %s642
        %s644 = ssub.s32 1, %s641
        %s645 = scalar_lea.vmem %s616, %s644 [#allocation2]
        %s646 = sshllo.u32 0, %s641
        loop: start=0, step=1, limit=1
        $region389: #{tpu_custom_call.1} parent=387 // loop_pre_header
          _
        $region390: #{tpu_custom_call.1} parent=387 // loop_header
          %s648 = sphi 0, %s652
          %p649 = scmp.ge.s32.totalorder %s648, 1
          %s653 = sphi %s643, %s643
          %s654 = sphi %s645, %s645
        $region391: #{tpu_custom_call.1} parent=387 // loop_header_branch
          %651 = sbr.rel (%p649) target = $region395
        $region392: #{tpu_custom_call.1} parent=387 // loop_body
          %v655 = vld [vmem:[%s653] sm:%s646]
          %656 = vst [vmem:[%s654] sm:%s646] %v655
        $region393: #{tpu_custom_call.1} parent=387 // loop_footer
          %s652 = sadd.s32 1, %s648
        $region394: #{tpu_custom_call.1} parent=387 // loop_footer_branch
          %647 = sbr.rel target = $region390
        $region395: #{tpu_custom_call.1} parent=387 // loop_exit
          _
      $region388: #{tpu_custom_call.1} parent=372 // pred_fallthru
        _
    $region373: #{tpu_custom_call.1} parent=1 // pred_fallthru
      _
    // Predicated region
    $region374: #{tpu_custom_call.1} parent=1 // pred_check
      %p622 = pneg %p618
    $region375: #{tpu_custom_call.1} parent=1 // pred_check_branch
      %624 = sbr.rel (%p622) target = $region377
    $region376: #{tpu_custom_call.1} parent=1 // pred_region
      %s625 = sshllo.u32 0, 1
      loop: start=0, step=1, limit=1
      $region378: #{tpu_custom_call.1} parent=376 // loop_pre_header
        _
      $region379: #{tpu_custom_call.1} parent=376 // loop_header
        %s627 = sphi 0, %s631
        %p628 = scmp.ge.s32.totalorder %s627, 1
        %s632 = sphi %s615, %s615
        %s633 = sphi %s616, %s616
      $region380: #{tpu_custom_call.1} parent=376 // loop_header_branch
        %630 = sbr.rel (%p628) target = $region384
      $region381: #{tpu_custom_call.1} parent=376 // loop_body
        %v634 = vld [vmem:[%s632] sm:%s625]
        %635 = vst [vmem:[%s633] sm:%s625] %v634
      $region382: #{tpu_custom_call.1} parent=376 // loop_footer
        %s631 = sadd.s32 1, %s627
      $region383: #{tpu_custom_call.1} parent=376 // loop_footer_branch
        %626 = sbr.rel target = $region379
      $region384: #{tpu_custom_call.1} parent=376 // loop_exit
        _
    $region377: #{tpu_custom_call.1} parent=1 // pred_fallthru
      _
    // Predicated region
    $region396: #{tpu_custom_call.1} parent=1 // pred_check
      _
    $region397: #{tpu_custom_call.1} parent=1 // pred_check_branch
      %659 = sbr.rel (0) target = $region399
    $region398: #{tpu_custom_call.1} parent=1 // pred_region
      %660 = vsyncadd %s218, 16
    $region399: #{tpu_custom_call.1} parent=1 // pred_fallthru
      _
    %s661 = sshll.u32 %s410, 4
    %662 = dma.done %s267, %s661
    %s663 = sadd.s32 %s20, 13
    %s664 = sld [smem:[#allocation5 + %s663]]
    %s665 = scalar_lea.vmem %s1, %s664
    %s666 = scalar_lea.vmem [#allocation2], 13
    %p668 = scmp.lt.u32.totalorder 1, 8
    %p669 = pneg %p668
    // Predicated region
    $region400: #{tpu_custom_call.1} parent=1 // pred_check
      _
    $region401: #{tpu_custom_call.1} parent=1 // pred_check_branch
      %671 = sbr.rel (%p668) target = $region403
    $region402: #{tpu_custom_call.1} parent=1 // pred_region
      %s686 = sand.u32 1, 7
      %p687 = scmp.eq.s32.totalorder %s686, 0
      %p688 = pneg %p687
      // Predicated region
      $region415: #{tpu_custom_call.1} parent=402 // pred_check
        _
      $region416: #{tpu_custom_call.1} parent=402 // pred_check_branch
        %690 = sbr.rel (%p687) target = $region418
      $region417: #{tpu_custom_call.1} parent=402 // pred_region
        %s691 = sand.u32 1, 7
        %s692 = ssub.s32 1, %s691
        %s693 = scalar_lea.vmem %s665, %s692
        %s694 = ssub.s32 1, %s691
        %s695 = scalar_lea.vmem %s666, %s694 [#allocation2]
        %s696 = sshllo.u32 0, %s691
        loop: start=0, step=1, limit=1
        $region419: #{tpu_custom_call.1} parent=417 // loop_pre_header
          _
        $region420: #{tpu_custom_call.1} parent=417 // loop_header
          %s698 = sphi 0, %s702
          %p699 = scmp.ge.s32.totalorder %s698, 1
          %s703 = sphi %s693, %s693
          %s704 = sphi %s695, %s695
        $region421: #{tpu_custom_call.1} parent=417 // loop_header_branch
          %701 = sbr.rel (%p699) target = $region425
        $region422: #{tpu_custom_call.1} parent=417 // loop_body
          %v705 = vld [vmem:[%s703] sm:%s696]
          %706 = vst [vmem:[%s704] sm:%s696] %v705
        $region423: #{tpu_custom_call.1} parent=417 // loop_footer
          %s702 = sadd.s32 1, %s698
        $region424: #{tpu_custom_call.1} parent=417 // loop_footer_branch
          %697 = sbr.rel target = $region420
        $region425: #{tpu_custom_call.1} parent=417 // loop_exit
          _
      $region418: #{tpu_custom_call.1} parent=402 // pred_fallthru
        _
    $region403: #{tpu_custom_call.1} parent=1 // pred_fallthru
      _
    // Predicated region
    $region404: #{tpu_custom_call.1} parent=1 // pred_check
      %p672 = pneg %p668
    $region405: #{tpu_custom_call.1} parent=1 // pred_check_branch
      %674 = sbr.rel (%p672) target = $region407
    $region406: #{tpu_custom_call.1} parent=1 // pred_region
      %s675 = sshllo.u32 0, 1
      loop: start=0, step=1, limit=1
      $region408: #{tpu_custom_call.1} parent=406 // loop_pre_header
        _
      $region409: #{tpu_custom_call.1} parent=406 // loop_header
        %s677 = sphi 0, %s681
        %p678 = scmp.ge.s32.totalorder %s677, 1
        %s682 = sphi %s665, %s665
        %s683 = sphi %s666, %s666
      $region410: #{tpu_custom_call.1} parent=406 // loop_header_branch
        %680 = sbr.rel (%p678) target = $region414
      $region411: #{tpu_custom_call.1} parent=406 // loop_body
        %v684 = vld [vmem:[%s682] sm:%s675]
        %685 = vst [vmem:[%s683] sm:%s675] %v684
      $region412: #{tpu_custom_call.1} parent=406 // loop_footer
        %s681 = sadd.s32 1, %s677
      $region413: #{tpu_custom_call.1} parent=406 // loop_footer_branch
        %676 = sbr.rel target = $region409
      $region414: #{tpu_custom_call.1} parent=406 // loop_exit
        _
    $region407: #{tpu_custom_call.1} parent=1 // pred_fallthru
      _
    // Predicated region
    $region426: #{tpu_custom_call.1} parent=1 // pred_check
      _
    $region427: #{tpu_custom_call.1} parent=1 // pred_check_branch
      %709 = sbr.rel (0) target = $region429
    $region428: #{tpu_custom_call.1} parent=1 // pred_region
      %710 = vsyncadd %s267, 16
    $region429: #{tpu_custom_call.1} parent=1 // pred_fallthru
      _
    %s711 = sshll.u32 %s410, 4
    %712 = dma.done %s316, %s711
    %s713 = sadd.s32 %s20, 14
    %s714 = sld [smem:[#allocation5 + %s713]]
    %s715 = scalar_lea.vmem %s1, %s714
    %s716 = scalar_lea.vmem [#allocation2], 14
    %p718 = scmp.lt.u32.totalorder 1, 8
    %p719 = pneg %p718
    // Predicated region
    $region430: #{tpu_custom_call.1} parent=1 // pred_check
      _
    $region431: #{tpu_custom_call.1} parent=1 // pred_check_branch
      %721 = sbr.rel (%p718) target = $region433
    $region432: #{tpu_custom_call.1} parent=1 // pred_region
      %s736 = sand.u32 1, 7
      %p737 = scmp.eq.s32.totalorder %s736, 0
      %p738 = pneg %p737
      // Predicated region
      $region445: #{tpu_custom_call.1} parent=432 // pred_check
        _
      $region446: #{tpu_custom_call.1} parent=432 // pred_check_branch
        %740 = sbr.rel (%p737) target = $region448
      $region447: #{tpu_custom_call.1} parent=432 // pred_region
        %s741 = sand.u32 1, 7
        %s742 = ssub.s32 1, %s741
        %s743 = scalar_lea.vmem %s715, %s742
        %s744 = ssub.s32 1, %s741
        %s745 = scalar_lea.vmem %s716, %s744 [#allocation2]
        %s746 = sshllo.u32 0, %s741
        loop: start=0, step=1, limit=1
        $region449: #{tpu_custom_call.1} parent=447 // loop_pre_header
          _
        $region450: #{tpu_custom_call.1} parent=447 // loop_header
          %s748 = sphi 0, %s752
          %p749 = scmp.ge.s32.totalorder %s748, 1
          %s753 = sphi %s743, %s743
          %s754 = sphi %s745, %s745
        $region451: #{tpu_custom_call.1} parent=447 // loop_header_branch
          %751 = sbr.rel (%p749) target = $region455
        $region452: #{tpu_custom_call.1} parent=447 // loop_body
          %v755 = vld [vmem:[%s753] sm:%s746]
          %756 = vst [vmem:[%s754] sm:%s746] %v755
        $region453: #{tpu_custom_call.1} parent=447 // loop_footer
          %s752 = sadd.s32 1, %s748
        $region454: #{tpu_custom_call.1} parent=447 // loop_footer_branch
          %747 = sbr.rel target = $region450
        $region455: #{tpu_custom_call.1} parent=447 // loop_exit
          _
      $region448: #{tpu_custom_call.1} parent=432 // pred_fallthru
        _
    $region433: #{tpu_custom_call.1} parent=1 // pred_fallthru
      _
    // Predicated region
    $region434: #{tpu_custom_call.1} parent=1 // pred_check
      %p722 = pneg %p718
    $region435: #{tpu_custom_call.1} parent=1 // pred_check_branch
      %724 = sbr.rel (%p722) target = $region437
    $region436: #{tpu_custom_call.1} parent=1 // pred_region
      %s725 = sshllo.u32 0, 1
      loop: start=0, step=1, limit=1
      $region438: #{tpu_custom_call.1} parent=436 // loop_pre_header
        _
      $region439: #{tpu_custom_call.1} parent=436 // loop_header
        %s727 = sphi 0, %s731
        %p728 = scmp.ge.s32.totalorder %s727, 1
        %s732 = sphi %s715, %s715
        %s733 = sphi %s716, %s716
      $region440: #{tpu_custom_call.1} parent=436 // loop_header_branch
        %730 = sbr.rel (%p728) target = $region444
      $region441: #{tpu_custom_call.1} parent=436 // loop_body
        %v734 = vld [vmem:[%s732] sm:%s725]
        %735 = vst [vmem:[%s733] sm:%s725] %v734
      $region442: #{tpu_custom_call.1} parent=436 // loop_footer
        %s731 = sadd.s32 1, %s727
      $region443: #{tpu_custom_call.1} parent=436 // loop_footer_branch
        %726 = sbr.rel target = $region439
      $region444: #{tpu_custom_call.1} parent=436 // loop_exit
        _
    $region437: #{tpu_custom_call.1} parent=1 // pred_fallthru
      _
    // Predicated region
    $region456: #{tpu_custom_call.1} parent=1 // pred_check
      _
    $region457: #{tpu_custom_call.1} parent=1 // pred_check_branch
      %759 = sbr.rel (0) target = $region459
    $region458: #{tpu_custom_call.1} parent=1 // pred_region
      %760 = vsyncadd %s316, 16
    $region459: #{tpu_custom_call.1} parent=1 // pred_fallthru
      _
    %s761 = sshll.u32 %s410, 4
    %762 = dma.done %s365, %s761
    %s763 = sadd.s32 %s20, 15
    %s764 = sld [smem:[#allocation5 + %s763]]
    %s765 = scalar_lea.vmem %s1, %s764
    %s766 = scalar_lea.vmem [#allocation2], 15
    %p768 = scmp.lt.u32.totalorder 1, 8
    %p769 = pneg %p768
    // Predicated region
    $region460: #{tpu_custom_call.1} parent=1 // pred_check
      _
    $region461: #{tpu_custom_call.1} parent=1 // pred_check_branch
      %771 = sbr.rel (%p768) target = $region463
    $region462: #{tpu_custom_call.1} parent=1 // pred_region
      %s786 = sand.u32 1, 7
      %p787 = scmp.eq.s32.totalorder %s786, 0
      %p788 = pneg %p787
      // Predicated region
      $region475: #{tpu_custom_call.1} parent=462 // pred_check
        _
      $region476: #{tpu_custom_call.1} parent=462 // pred_check_branch
        %790 = sbr.rel (%p787) target = $region478
      $region477: #{tpu_custom_call.1} parent=462 // pred_region
        %s791 = sand.u32 1, 7
        %s792 = ssub.s32 1, %s791
        %s793 = scalar_lea.vmem %s765, %s792
        %s794 = ssub.s32 1, %s791
        %s795 = scalar_lea.vmem %s766, %s794 [#allocation2]
        %s796 = sshllo.u32 0, %s791
        loop: start=0, step=1, limit=1
        $region479: #{tpu_custom_call.1} parent=477 // loop_pre_header
          _
        $region480: #{tpu_custom_call.1} parent=477 // loop_header
          %s798 = sphi 0, %s802
          %p799 = scmp.ge.s32.totalorder %s798, 1
          %s803 = sphi %s793, %s793
          %s804 = sphi %s795, %s795
        $region481: #{tpu_custom_call.1} parent=477 // loop_header_branch
          %801 = sbr.rel (%p799) target = $region485
        $region482: #{tpu_custom_call.1} parent=477 // loop_body
          %v805 = vld [vmem:[%s803] sm:%s796]
          %806 = vst [vmem:[%s804] sm:%s796] %v805
        $region483: #{tpu_custom_call.1} parent=477 // loop_footer
          %s802 = sadd.s32 1, %s798
        $region484: #{tpu_custom_call.1} parent=477 // loop_footer_branch
          %797 = sbr.rel target = $region480
        $region485: #{tpu_custom_call.1} parent=477 // loop_exit
          _
      $region478: #{tpu_custom_call.1} parent=462 // pred_fallthru
        _
    $region463: #{tpu_custom_call.1} parent=1 // pred_fallthru
      _
    // Predicated region
    $region464: #{tpu_custom_call.1} parent=1 // pred_check
      %p772 = pneg %p768
    $region465: #{tpu_custom_call.1} parent=1 // pred_check_branch
      %774 = sbr.rel (%p772) target = $region467
    $region466: #{tpu_custom_call.1} parent=1 // pred_region
      %s775 = sshllo.u32 0, 1
      loop: start=0, step=1, limit=1
      $region468: #{tpu_custom_call.1} parent=466 // loop_pre_header
        _
      $region469: #{tpu_custom_call.1} parent=466 // loop_header
        %s777 = sphi 0, %s781
        %p778 = scmp.ge.s32.totalorder %s777, 1
        %s782 = sphi %s765, %s765
        %s783 = sphi %s766, %s766
      $region470: #{tpu_custom_call.1} parent=466 // loop_header_branch
        %780 = sbr.rel (%p778) target = $region474
      $region471: #{tpu_custom_call.1} parent=466 // loop_body
        %v784 = vld [vmem:[%s782] sm:%s775]
        %785 = vst [vmem:[%s783] sm:%s775] %v784
      $region472: #{tpu_custom_call.1} parent=466 // loop_footer
        %s781 = sadd.s32 1, %s777
      $region473: #{tpu_custom_call.1} parent=466 // loop_footer_branch
        %776 = sbr.rel target = $region469
      $region474: #{tpu_custom_call.1} parent=466 // loop_exit
        _
    $region467: #{tpu_custom_call.1} parent=1 // pred_fallthru
      _
    // Predicated region
    $region486: #{tpu_custom_call.1} parent=1 // pred_check
      _
    $region487: #{tpu_custom_call.1} parent=1 // pred_check_branch
      %809 = sbr.rel (0) target = $region489
    $region488: #{tpu_custom_call.1} parent=1 // pred_region
      %810 = vsyncadd %s365, 16
    $region489: #{tpu_custom_call.1} parent=1 // pred_fallthru
      _
    %s811 = sshll.u32 %s410, 4
    %812 = dma.done [#allocation3], %s811
    %s813 = sshll.u32 %s410, 4
    %814 = dma.done %s71, %s813
    %s815 = sshll.u32 %s410, 4
    %816 = dma.done %s120, %s815
    %s817 = sshll.u32 %s410, 4
    %818 = dma.done %s169, %s817
    %s819 = sshll.u32 %s410, 4
    %820 = dma.done %s218, %s819
    %s821 = sshll.u32 %s410, 4
    %822 = dma.done %s267, %s821
    %s823 = sshll.u32 %s410, 4
    %824 = dma.done %s316, %s823
    %s825 = sshll.u32 %s410, 4
    %826 = dma.done %s365, %s825
    %v827 = vld [vmem:[#allocation2] sm:$0xff]
    %v828 = vld [vmem:[#allocation2 + $0x8] sm:$0xff]
    %vm829 = vcmask 261120
    %v830 = vsel %vm829, %v827, 0.0
    %831 = vadd.xlane.f32.xlu0 %v830
    %v832 = vpop.xlane.xlu0 %831
    %v833 = vsel %vm829, %v828, 0.0
    %834 = vadd.xlane.f32.xlu0 %v833
    %v835 = vpop.xlane.xlu0 %834
    %v836 = vmul.f32 %v827, %v827
    %v837 = vmul.f32 %v828, %v828
    %v838 = vsel %vm829, %v836, 0.0
    %839 = vadd.xlane.f32.xlu0 %v838
    %v840 = vpop.xlane.xlu0 %839
    %v841 = vsel %vm829, %v837, 0.0
    %842 = vadd.xlane.f32.xlu0 %v841
    %v843 = vpop.xlane.xlu0 %842
    %v844 = vmul.f32 %v832, 0.03125
    %v845 = vmul.f32 %v835, 0.03125
    %v846 = vmul.f32 %v840, 0.03125
    %v847 = vmul.f32 %v843, 0.03125
    %v848 = vmul.f32 %v844, %v844
    %v849 = vmul.f32 %v845, %v845
    %v850 = vsub.f32 %v846, %v848
    %v851 = vsub.f32 %v847, %v849
    %v852 = vmax.f32 %v850, 0.0
    %v853 = vmax.f32 %v851, 0.0
    %v854 = vadd.f32 %v852, 1e-12
    %v855 = vadd.f32 %v853, 1e-12
    %v856 = vrsqrt.pop %v854
    %v857 = vrsqrt.pop %v855
    %v858 = vsub.f32 %v827, %v844
    %v859 = vsub.f32 %v828, %v845
    %v860 = vmul.f32 %v858, %v856
    %v861 = vmul.f32 %v859, %v857
    %v862 = vld [vmem:[%s2] sm:$0x1]
    %v864 = vlaneseq
    %v865 = vshrl.u32 %v864, 7
    %v866 = vsub.s32 0, %v865
    %v867 = vrot.slane %v862, %v866
    %v869 = vmul.f32 %v860, %v867
    %v870 = vmul.f32 %v861, %v867
    %v871 = vld [vmem:[%s3] sm:$0x1]
    %v873 = vlaneseq
    %v874 = vshrl.u32 %v873, 7
    %v875 = vsub.s32 0, %v874
    %v876 = vrot.slane %v871, %v875
    %v878 = vadd.f32 %v869, %v876
    %v879 = vadd.f32 %v870, %v876
    %880 = vst.msk [vmem:[#allocation6] sm:$0xff] %vm829, %v878
    %881 = vst.msk [vmem:[#allocation6 + $0x8] sm:$0xff] %vm829, %v879
    // Predicated region
    $region490: #{tpu_custom_call.1} parent=1 // pred_check
      _
    $region491: #{tpu_custom_call.1} parent=1 // pred_check_branch
      %883 = sbr.rel (0) target = $region493
    $region492: #{tpu_custom_call.1} parent=1 // pred_region
      %s885 = ssub.s32 256, 256
      %886 = vsyncadd [#allocation7], %s885
      %s887 = sshll.u32 [#allocation6], 4
      %s888 = int_to_ptr.vmem [resolvable:$true] %s887
      %893 = dma.vmem_to_hbm [thread:$0]  %s888, 256, %s4, [#allocation7], 128, 128, 8
    $region493: #{tpu_custom_call.1} parent=1 // pred_fallthru
      _
    // Predicated region
    $region494: #{tpu_custom_call.1} parent=1 // pred_check
      _
    $region495: #{tpu_custom_call.1} parent=1 // pred_check_branch
      %895 = sbr.rel (0) target = $region497
    $region496: #{tpu_custom_call.1} parent=1 // pred_region
      %896 = dma.done [#allocation7], 256
    $region497: #{tpu_custom_call.1} parent=1 // pred_fallthru
      _
    %897 = vsyncpa [#allocation7], 1
  %898 = vsyncmov [#allocation3]
  %s899 = vpop.sfrf %898
  %p900 = scmp.eq.s32.totalorder %s899, 0
  %p901 = pneg %p900
  %903 = shalt.err (%p901)
  %s904 = scalar_lea.sflag [#allocation3], 1
  %905 = vsyncmov %s904
  %s906 = vpop.sfrf %905
  %p907 = scmp.eq.s32.totalorder %s906, 0
  %p908 = pneg %p907
  %910 = shalt.err (%p908)
  %s911 = scalar_lea.sflag [#allocation3], 2
  %912 = vsyncmov %s911
  %s913 = vpop.sfrf %912
  %p914 = scmp.eq.s32.totalorder %s913, 0
  %p915 = pneg %p914
  %917 = shalt.err (%p915)
  %s918 = scalar_lea.sflag [#allocation3], 3
  %919 = vsyncmov %s918
  %s920 = vpop.sfrf %919
  %p921 = scmp.eq.s32.totalorder %s920, 0
  %p922 = pneg %p921
  %924 = shalt.err (%p922)
  %s925 = scalar_lea.sflag [#allocation3], 4
  %926 = vsyncmov %s925
  %s927 = vpop.sfrf %926
  %p928 = scmp.eq.s32.totalorder %s927, 0
  %p929 = pneg %p928
  %931 = shalt.err (%p929)
  %s932 = scalar_lea.sflag [#allocation3], 5
  %933 = vsyncmov %s932
  %s934 = vpop.sfrf %933
  %p935 = scmp.eq.s32.totalorder %s934, 0
  %p936 = pneg %p935
  %938 = shalt.err (%p936)
  %s939 = scalar_lea.sflag [#allocation3], 6
  %940 = vsyncmov %s939
  %s941 = vpop.sfrf %940
  %p942 = scmp.eq.s32.totalorder %s941, 0
  %p943 = pneg %p942
  %945 = shalt.err (%p943)
  %s946 = scalar_lea.sflag [#allocation3], 7
  %947 = vsyncmov %s946
  %s948 = vpop.sfrf %947
  %p949 = scmp.eq.s32.totalorder %s948, 0
  %p950 = pneg %p949
  %952 = shalt.err (%p950)

</llo_original>
